<compile_context>
chip_gen: v6e
topology: v6e:2x2x1
jax: 0.10.0
libtpu: 0.0.40
codegen_flags: <defaults>
</compile_context>

<pallas_src>
import jax
import jax.numpy as jnp
import numpy as np
from jax.experimental import pallas as pl
from jax.experimental.pallas import tpu as pltpu

K_CHEB = 3  # K=2 ChebConv -> 3 polynomial terms (T0, T1, T2)


# ----------------------------- Pallas kernel ---------------------------------

def _res_cheb_stack_kernel(x_ref, temb_ref, m1_ref, b1_ref, wt_ref, bt_ref,
                           m2_ref, b2_ref, o_ref, act_ref):
    # Grid = (batch_blocks, L); axis 1 (layers) is sequential ("arbitrary").
    # x_ref:    (bb, N*C)   f32   input activations (used only at layer 0)
    # temb_ref: (bb, E)     f32
    # m1_ref:   (N*C, N*H)  bf16  graph-folded gconv1 weight for layer l
    # b1_ref:   (1, N*H)    f32   node-tiled gconv1 bias
    # wt_ref:   (E, N*H)    bf16  node-tiled temb-projection weight
    # bt_ref:   (1, N*H)    f32   node-tiled temb-projection bias
    # m2_ref:   (N*H, N*C)  bf16  graph-folded gconv2 weight
    # b2_ref:   (1, N*C)    f32   node-tiled gconv2 bias
    # o_ref:    (bb, N*C)   f32   output (written once, at the last layer)
    # act_ref:  (bb, N*C)   f32   VMEM-resident activation carried across layers
    l = pl.program_id(1)

    @pl.when(l == 0)
    def _():
        act_ref[...] = x_ref[...]

    x = act_ref[...]
    temb = temb_ref[...]
    silu = (temb * jax.nn.sigmoid(temb)).astype(jnp.bfloat16)

    # gconv1: ChebConv(K=2) with the graph operator pre-folded -> one bf16 MXU
    # matmul with f32 accumulation, then bias + ReLU.
    h = jnp.dot(x.astype(jnp.bfloat16), m1_ref[...],
                preferred_element_type=jnp.float32) + b1_ref[...]
    h = jnp.maximum(h, 0.0)

    # time-embedding projection; the per-node broadcast is pre-folded into the
    # node-tiled weight, so the result is directly [bb, N*H].
    h = h + jnp.dot(silu, wt_ref[...],
                    preferred_element_type=jnp.float32) + bt_ref[...]
    # TODO(synk): dropout(p_dropout) is identity at inference; not implemented.

    # gconv2: ChebConv(K=2) + ReLU.
    o = jnp.dot(h.astype(jnp.bfloat16), m2_ref[...],
                preferred_element_type=jnp.float32) + b2_ref[...]
    o = jnp.maximum(o, 0.0)

    # residual (requires Cin == Cout, as in the module); carried to next layer.
    act_ref[...] = x + o

    @pl.when(l == pl.num_programs(1) - 1)
    def _():
        o_ref[...] = act_ref[...].astype(o_ref.dtype)


def _vmem_estimate_bytes(bb, nc, nh, e, w_itemsize):
    weights = (nc * nh + e * nh + nh * nc) * w_itemsize + (2 * nh + nc) * 4
    acts = bb * nc * 4 * 2 + bb * e * 4          # x block + out block + temb block
    scratch = bb * nc * 4
    return 2 * (weights + acts) + scratch         # default double-buffering


@jax.jit
def res_cheb_gc_diff_stack(x, temb, m1s, b1s, wts, bts, m2s, b2s):
    """Fused stack of L _ResChebGC_diff layers (L=1 == the single module).

    x: [B, N, C]; temb: [B, E]; stacked folded params from stack_layer_params():
    m1s [L, N*C, N*H] bf16, b1s [L, 1, N*H] f32, wts [L, E, N*H] bf16,
    bts [L, 1, N*H] f32, m2s [L, N*H, N*C] bf16, b2s [L, 1, N*C] f32.
    """
    B, N, C = x.shape
    E = temb.shape[-1]
    L, NC, NH = m1s.shape
    NCo = m2s.shape[2]
    assert NC == N * C and NCo == NC, "residual add requires input_dim == output_dim"

    x_flat = x.reshape(B, NC)                     # lane-dense presentation (free in XLA)

    # Pad the batch to a multiple of 8 sublanes: unmasked full-vreg stores.
    Bp = ((B + 7) // 8) * 8
    if Bp != B:
        x_flat = jnp.pad(x_flat, ((0, Bp - B), (0, 0)))
        temb_p = jnp.pad(temb, ((0, Bp - B), (0, 0)))
    else:
        temb_p = temb

    # Only split the batch (and use megacore "parallel") when there are at
    # least two full 256-row blocks; small batches stay in a single block so
    # the weight DMA is never duplicated per TensorCore.
    if Bp >= 512 and Bp % 256 == 0:
        bb = 256
    else:
        bb = Bp
    num_bb = Bp // bb

    # VMEM budget guard: folded formulation grows as (N*C)*(N*H); switch to a
    # stacked-T formulation before exceeding the scoped default (~32 MiB v7x).
    vmem_est = _vmem_estimate_bytes(bb, NC, NH, E, jnp.dtype(m1s.dtype).itemsize)
    assert vmem_est < 24 * 1024 * 1024, (
        f"folded-weight VMEM estimate {vmem_est} B too large; use stacked-T form")

    grid_spec = pltpu.PrefetchScalarGridSpec(
        num_scalar_prefetch=0,
        grid=(num_bb, L),
        in_specs=[
            pl.BlockSpec((bb, NC), lambda b, l: (b, 0)),          # x (layer-invariant)
            pl.BlockSpec((bb, E), lambda b, l: (b, 0)),           # temb (layer-invariant)
            pl.BlockSpec((None, NC, NH), lambda b, l: (l, 0, 0)),  # M1[l]
            pl.BlockSpec((None, 1, NH), lambda b, l: (l, 0, 0)),   # b1[l]
            pl.BlockSpec((None, E, NH), lambda b, l: (l, 0, 0)),   # Wt[l]
            pl.BlockSpec((None, 1, NH), lambda b, l: (l, 0, 0)),   # bt[l]
            pl.BlockSpec((None, NH, NC), lambda b, l: (l, 0, 0)),  # M2[l]
            pl.BlockSpec((None, 1, NC), lambda b, l: (l, 0, 0)),   # b2[l]
        ],
        out_specs=pl.BlockSpec((bb, NC), lambda b, l: (b, 0)),     # resident across l
        scratch_shapes=[pltpu.VMEM((bb, NC), jnp.float32)],        # activation carry
    )
    out_flat = pl.pallas_call(
        _res_cheb_stack_kernel,
        out_shape=jax.ShapeDtypeStruct((Bp, NC), x.dtype),
        grid_spec=grid_spec,
        compiler_params=pltpu.CompilerParams(
            dimension_semantics=("parallel", "arbitrary")),
    )(x_flat, temb_p, m1s, b1s, wts, bts, m2s, b2s)
    return out_flat[:B].reshape(B, N, C)


# ----------------------------- setup glue (plain JAX, run once) ---------------

def build_cheb_polynomials(adj):
    """Normalized Laplacian + Chebyshev polynomials T0..T2 (ChebConv K=2)."""
    n = adj.shape[0]
    deg = jnp.sum(adj, axis=-1)
    d_inv_sqrt = jnp.where(deg > 0, deg ** (-0.5), 0.0)    # guard isolated nodes
    eye = jnp.eye(n, dtype=adj.dtype)
    lap = eye - d_inv_sqrt[:, None] * adj * d_inv_sqrt[None, :]
    return jnp.stack([eye, lap, 2.0 * (lap @ lap) - eye], axis=0)


def fold_cheb_weights(cheb, w):
    """M[m*C + c, n*H + h] = sum_k T_k[n, m] * w[k, c, h] so that
    ChebConv(x)[b].reshape(N*H) == x[b].reshape(N*C) @ M  (then + bias)."""
    _, n, _ = cheb.shape
    _, c, h = w.shape
    return jnp.einsum('knm,kch->mcnh', cheb, w).reshape(n * c, n * h)


def fold_layer_params(cheb, w1, b1, wt, bt, w2, b2):
    """One-time fold for one layer: graph-folded conv weights plus node-tiled
    biases / temb projection, all lane-dense for the kernel."""
    n = cheb.shape[1]
    m1 = fold_cheb_weights(cheb, w1)                   # [N*Cin, N*H]
    m2 = fold_cheb_weights(cheb, w2)                   # [N*H,   N*Cout]
    b1t = jnp.tile(b1.reshape(1, -1), (1, n))          # [1, N*H]
    b2t = jnp.tile(b2.reshape(1, -1), (1, n))          # [1, N*Cout]
    wtt = jnp.tile(wt, (1, n))                         # [E, N*H]
    btt = jnp.tile(bt.reshape(1, -1), (1, n))          # [1, N*H]
    return m1, b1t, wtt, btt, m2, b2t


def stack_layer_params(folded_layers, weight_dtype=jnp.bfloat16):
    """Stack per-layer folded params; weights quantized to bf16 (biases f32)."""
    m1s = jnp.stack([p[0] for p in folded_layers]).astype(weight_dtype)
    b1s = jnp.stack([p[1] for p in folded_layers])
    wts = jnp.stack([p[2] for p in folded_layers]).astype(weight_dtype)
    bts = jnp.stack([p[3] for p in folded_layers])
    m2s = jnp.stack([p[4] for p in folded_layers]).astype(weight_dtype)
    b2s = jnp.stack([p[5] for p in folded_layers])
    return m1s, b1s, wts, bts, m2s, b2s


# ----------------------------- references -------------------------------------

def reference_forward(x, temb, cheb, raw_layers):
    """Pure-JAX f32 reference of the module semantics (applied per layer)."""
    def cheb_conv(inp, w, b):
        r = jnp.einsum('knm,bmc->kbnc', cheb, inp)
        r = jnp.einsum('kbnc,kco->bno', r, w)
        return r + b[None, None, :]

    tsilu = temb * jax.nn.sigmoid(temb)
    out = x
    for (w1, b1, wt, bt, w2, b2) in raw_layers:
        h = jax.nn.relu(cheb_conv(out, w1, b1))
        h = h + (tsilu @ wt + bt)[:, None, :]
        o = jax.nn.relu(cheb_conv(h, w2, b2))
        out = out + o
    return out


def folded_reference(x, temb, stacked):
    """Pure-JAX reference with the same folded/bf16-quantized parameters
    (mirrors the kernel's numerics for a tight check)."""
    m1s, b1s, wts, bts, m2s, b2s = stacked
    B, N, C = x.shape
    act = x.reshape(B, N * C)
    tsilu = (temb * jax.nn.sigmoid(temb)).astype(jnp.bfloat16)
    for l in range(m1s.shape[0]):
        h = jnp.dot(act.astype(jnp.bfloat16), m1s[l],
                    preferred_element_type=jnp.float32) + b1s[l]
        h = jnp.maximum(h, 0.0)
        h = h + jnp.dot(tsilu, wts[l],
                        preferred_element_type=jnp.float32) + bts[l]
        o = jnp.dot(h.astype(jnp.bfloat16), m2s[l],
                    preferred_element_type=jnp.float32) + b2s[l]
        o = jnp.maximum(o, 0.0)
        act = act + o
    return act.reshape(B, N, C)


# ----------------------------- demo / check ------------------------------------

if __name__ == "__main__":
    # Shapes implied by the module: B batches, N graph nodes (joints),
    # input_dim == output_dim (residual), hidden dim, time-embedding dim.
    B, N = 2, 16
    IN_DIM = 32
    HID = 32
    EMD = 64
    L = 3          # depth of the fused stack demo; L=1 == the single module

    key = jax.random.PRNGKey(0)

    # Deterministic adjacency: chain graph over N joints + self loops (symmetric).
    a = np.zeros((N, N), np.float32)
    for i in range(N - 1):
        a[i, i + 1] = 1.0
        a[i + 1, i] = 1.0
    a += np.eye(N, dtype=np.float32)
    cheb = build_cheb_polynomials(jnp.asarray(a))                    # [3, N, N]

    # Synthetic per-layer parameters (shapes per module __init__).
    raw_layers = []
    for l in range(L):
        key, *ks = jax.random.split(key, 5)
        w1 = jax.random.normal(ks[0], (K_CHEB, IN_DIM, HID), jnp.float32) * 0.05
        b1 = jax.random.normal(ks[1], (HID,), jnp.float32) * 0.01
        w2 = jax.random.normal(ks[2], (K_CHEB, HID, IN_DIM), jnp.float32) * 0.05
        b2 = jax.random.normal(ks[3], (IN_DIM,), jnp.float32) * 0.01
        key, k_wt, k_bt = jax.random.split(key, 3)
        wt = jax.random.normal(k_wt, (EMD, HID), jnp.float32) * 0.05
        bt = jax.random.normal(k_bt, (HID,), jnp.float32) * 0.01
        raw_layers.append((w1, b1, wt, bt, w2, b2))

    key, kx, kt = jax.random.split(key, 3)
    x = jax.random.normal(kx, (B, N, IN_DIM), jnp.float32)
    temb = jax.random.normal(kt, (B, EMD), jnp.float32)

    # One-time fold of the fixed graph operator into the weights (bf16 slabs).
    folded = [fold_layer_params(cheb, *p) for p in raw_layers]

    for depth in (1, L):
        stacked = stack_layer_params(folded[:depth])
        out = res_cheb_gc_diff_stack(x, temb, *stacked)
        out = jax.block_until_ready(out)

        # Tight check: identical folded/bf16 numerics, pure-JAX.
        ref_q = folded_reference(x, temb, stacked)
        np.testing.assert_allclose(np.asarray(out), np.asarray(ref_q),
                                   rtol=5e-3, atol=5e-3)
        # Loose check: original module semantics in full f32.
        ref_f32 = reference_forward(x, temb, cheb, raw_layers[:depth])
        np.testing.assert_allclose(np.asarray(out), np.asarray(ref_f32),
                                   rtol=5e-2, atol=5e-2)

    print("KERNEL_OK")
</pallas_src>

<mosaic_0001>
module attributes {stable_mosaic.version = 11 : i64} {
  func.func @_res_cheb_stack_kernel(%arg0: i32, %arg1: i32, %arg2: memref<8x512xf32, #tpu.memory_space<vmem>>, %arg3: memref<8x64xf32, #tpu.memory_space<vmem>>, %arg4: memref<1x512x512xbf16, #tpu.memory_space<vmem>>, %arg5: memref<1x1x512xf32, #tpu.memory_space<vmem>>, %arg6: memref<1x64x512xbf16, #tpu.memory_space<vmem>>, %arg7: memref<1x1x512xf32, #tpu.memory_space<vmem>>, %arg8: memref<1x512x512xbf16, #tpu.memory_space<vmem>>, %arg9: memref<1x1x512xf32, #tpu.memory_space<vmem>>, %arg10: memref<8x512xf32, #tpu.memory_space<vmem>>, %arg11: memref<8x512xf32, #tpu.memory_space<vmem>>) attributes {dimension_semantics = [#tpu.dimension_semantics<parallel>, #tpu.dimension_semantics<arbitrary>], iteration_bounds = array<i64: 1, 1>, scalar_prefetch = 0 : i64, scratch_operands = 1 : i64, tpu.core_type = #tpu.core_type<tc>, window_params = [{transform_indices = @transform_0, window_bounds = array<i64: 8, 512>}, {transform_indices = @transform_1, window_bounds = array<i64: 8, 64>}, {transform_indices = @transform_2, window_bounds = array<i64: 1, 512, 512>}, {transform_indices = @transform_3, window_bounds = array<i64: 1, 1, 512>}, {transform_indices = @transform_4, window_bounds = array<i64: 1, 64, 512>}, {transform_indices = @transform_5, window_bounds = array<i64: 1, 1, 512>}, {transform_indices = @transform_6, window_bounds = array<i64: 1, 512, 512>}, {transform_indices = @transform_7, window_bounds = array<i64: 1, 1, 512>}, {transform_indices = @transform_8, window_bounds = array<i64: 8, 512>}]} {
    %c0_i32 = arith.constant 0 : i32
    %0 = arith.cmpi eq, %arg1, %c0_i32 : i32
    %1 = arith.extui %0 : i1 to i32
    %c0_i32_0 = arith.constant 0 : i32
    %2 = arith.cmpi ne, %1, %c0_i32_0 : i32
    scf.if %2 {
      %c0_31 = arith.constant 0 : index
      %c0_32 = arith.constant 0 : index
      %45 = vector.load %arg2[%c0_31, %c0_32] : memref<8x512xf32, #tpu.memory_space<vmem>>, vector<8x512xf32>
      %c0_33 = arith.constant 0 : index
      %c0_34 = arith.constant 0 : index
      %46 = vector.load %arg11[%c0_33, %c0_34] : memref<8x512xf32, #tpu.memory_space<vmem>>, vector<8x512xf32>
      tpu.vector_store %arg11[%c0_33, %c0_34], %45 {strides = array<i32>} : memref<8x512xf32, #tpu.memory_space<vmem>>, vector<8x512xf32>,
    } else {
    }
    %c0 = arith.constant 0 : index
    %c0_1 = arith.constant 0 : index
    %3 = vector.load %arg11[%c0, %c0_1] : memref<8x512xf32, #tpu.memory_space<vmem>>, vector<8x512xf32>
    %c0_2 = arith.constant 0 : index
    %c0_3 = arith.constant 0 : index
    %4 = vector.load %arg3[%c0_2, %c0_3] : memref<8x64xf32, #tpu.memory_space<vmem>>, vector<8x64xf32>
    %5 = arith.negf %4 : vector<8x64xf32>
    %6 = math.exp %5 : vector<8x64xf32>
    %cst = arith.constant 1.000000e+00 : f32
    %7 = vector.broadcast %cst : f32 to vector<8x64xf32>
    %8 = arith.addf %7, %6 : vector<8x64xf32>
    %9 = arith.divf %7, %8 : vector<8x64xf32>
    %10 = arith.mulf %4, %9 : vector<8x64xf32>
    %11 = arith.truncf %10 : vector<8x64xf32> to vector<8x64xbf16>
    %12 = arith.truncf %3 : vector<8x512xf32> to vector<8x512xbf16>
    %c0_4 = arith.constant 0 : index
    %c0_5 = arith.constant 0 : index
    %c0_6 = arith.constant 0 : index
    %13 = vector.load %arg4[%c0_4, %c0_5, %c0_6] : memref<1x512x512xbf16, #tpu.memory_space<vmem>>, vector<1x512x512xbf16>
    %14 = vector.shape_cast %13 : vector<1x512x512xbf16> to vector<512x512xbf16>
    %cst_7 = arith.constant dense<0.000000e+00> : vector<8x512xf32>
    %15 = tpu.matmul %12, %14, %cst_7 {dimension_numbers = #tpu.dot_dimension_numbers<[1], [0], [0], [1], [0, 0, 1, 1], [], []>} : vector<8x512xbf16>, vector<512x512xbf16>, vector<8x512xf32> -> vector<8x512xf32>
    %c0_8 = arith.constant 0 : index
    %c0_9 = arith.constant 0 : index
    %c0_10 = arith.constant 0 : index
    %16 = vector.load %arg5[%c0_8, %c0_9, %c0_10] : memref<1x1x512xf32, #tpu.memory_space<vmem>>, vector<1x1x512xf32>
    %17 = vector.shape_cast %16 : vector<1x1x512xf32> to vector<1x512xf32>
    %18 = vector.broadcast %17 : vector<1x512xf32> to vector<8x512xf32>
    %19 = arith.addf %15, %18 : vector<8x512xf32>
    %cst_11 = arith.constant 0.000000e+00 : f32
    %20 = vector.broadcast %cst_11 : f32 to vector<8x512xf32>
    %21 = arith.maximumf %19, %20 : vector<8x512xf32>
    %c0_12 = arith.constant 0 : index
    %c0_13 = arith.constant 0 : index
    %c0_14 = arith.constant 0 : index
    %22 = vector.load %arg6[%c0_12, %c0_13, %c0_14] : memref<1x64x512xbf16, #tpu.memory_space<vmem>>, vector<1x64x512xbf16>
    %23 = vector.shape_cast %22 : vector<1x64x512xbf16> to vector<64x512xbf16>
    %cst_15 = arith.constant dense<0.000000e+00> : vector<8x512xf32>
    %24 = tpu.matmul %11, %23, %cst_15 {dimension_numbers = #tpu.dot_dimension_numbers<[1], [0], [0], [1], [0, 0, 1, 1], [], []>} : vector<8x64xbf16>, vector<64x512xbf16>, vector<8x512xf32> -> vector<8x512xf32>
    %25 = arith.addf %21, %24 : vector<8x512xf32>
    %c0_16 = arith.constant 0 : index
    %c0_17 = arith.constant 0 : index
    %c0_18 = arith.constant 0 : index
    %26 = vector.load %arg7[%c0_16, %c0_17, %c0_18] : memref<1x1x512xf32, #tpu.memory_space<vmem>>, vector<1x1x512xf32>
    %27 = vector.shape_cast %26 : vector<1x1x512xf32> to vector<1x512xf32>
    %28 = vector.broadcast %27 : vector<1x512xf32> to vector<8x512xf32>
    %29 = arith.addf %25, %28 : vector<8x512xf32>
    %30 = arith.truncf %29 : vector<8x512xf32> to vector<8x512xbf16>
    %c0_19 = arith.constant 0 : index
    %c0_20 = arith.constant 0 : index
    %c0_21 = arith.constant 0 : index
    %31 = vector.load %arg8[%c0_19, %c0_20, %c0_21] : memref<1x512x512xbf16, #tpu.memory_space<vmem>>, vector<1x512x512xbf16>
    %32 = vector.shape_cast %31 : vector<1x512x512xbf16> to vector<512x512xbf16>
    %cst_22 = arith.constant dense<0.000000e+00> : vector<8x512xf32>
    %33 = tpu.matmul %30, %32, %cst_22 {dimension_numbers = #tpu.dot_dimension_numbers<[1], [0], [0], [1], [0, 0, 1, 1], [], []>} : vector<8x512xbf16>, vector<512x512xbf16>, vector<8x512xf32> -> vector<8x512xf32>
    %c0_23 = arith.constant 0 : index
    %c0_24 = arith.constant 0 : index
    %c0_25 = arith.constant 0 : index
    %34 = vector.load %arg9[%c0_23, %c0_24, %c0_25] : memref<1x1x512xf32, #tpu.memory_space<vmem>>, vector<1x1x512xf32>
    %35 = vector.shape_cast %34 : vector<1x1x512xf32> to vector<1x512xf32>
    %36 = vector.broadcast %35 : vector<1x512xf32> to vector<8x512xf32>
    %37 = arith.addf %33, %36 : vector<8x512xf32>
    %cst_26 = arith.constant 0.000000e+00 : f32
    %38 = vector.broadcast %cst_26 : f32 to vector<8x512xf32>
    %39 = arith.maximumf %37, %38 : vector<8x512xf32>
    %40 = arith.addf %3, %39 : vector<8x512xf32>
    %c0_27 = arith.constant 0 : index
    %c0_28 = arith.constant 0 : index
    %41 = vector.load %arg11[%c0_27, %c0_28] : memref<8x512xf32, #tpu.memory_space<vmem>>, vector<8x512xf32>
    tpu.vector_store %arg11[%c0_27, %c0_28], %40 {strides = array<i32>} : memref<8x512xf32, #tpu.memory_space<vmem>>, vector<8x512xf32>,
    %c0_i32_29 = arith.constant 0 : i32
    %42 = arith.cmpi eq, %arg1, %c0_i32_29 : i32
    %43 = arith.extui %42 : i1 to i32
    %c0_i32_30 = arith.constant 0 : i32
    %44 = arith.cmpi ne, %43, %c0_i32_30 : i32
    scf.if %44 {
      %c0_31 = arith.constant 0 : index
      %c0_32 = arith.constant 0 : index
      %45 = vector.load %arg11[%c0_31, %c0_32] : memref<8x512xf32, #tpu.memory_space<vmem>>, vector<8x512xf32>
      %c0_33 = arith.constant 0 : index
      %c0_34 = arith.constant 0 : index
      %46 = vector.load %arg10[%c0_33, %c0_34] : memref<8x512xf32, #tpu.memory_space<vmem>>, vector<8x512xf32>
      tpu.vector_store %arg10[%c0_33, %c0_34], %45 {strides = array<i32>} : memref<8x512xf32, #tpu.memory_space<vmem>>, vector<8x512xf32>,
    } else {
    }
    return
  }
  func.func @transform_0(%arg0: i32, %arg1: i32) -> (i32, i32) {
    %c0_i32 = arith.constant 0 : i32
    %c0_i32_0 = arith.constant 0 : i32
    return %arg0, %c0_i32 : i32, i32
  }
  func.func @transform_1(%arg0: i32, %arg1: i32) -> (i32, i32) {
    %c0_i32 = arith.constant 0 : i32
    %c0_i32_0 = arith.constant 0 : i32
    return %arg0, %c0_i32 : i32, i32
  }
  func.func @transform_2(%arg0: i32, %arg1: i32) -> (i32, i32, i32) {
    %c0_i32 = arith.constant 0 : i32
    %c0_i32_0 = arith.constant 0 : i32
    %c0_i32_1 = arith.constant 0 : i32
    return %arg1, %c0_i32, %c0_i32_0 : i32, i32, i32
  }
  func.func @transform_3(%arg0: i32, %arg1: i32) -> (i32, i32, i32) {
    %c0_i32 = arith.constant 0 : i32
    %c0_i32_0 = arith.constant 0 : i32
    %c0_i32_1 = arith.constant 0 : i32
    return %arg1, %c0_i32, %c0_i32_0 : i32, i32, i32
  }
  func.func @transform_4(%arg0: i32, %arg1: i32) -> (i32, i32, i32) {
    %c0_i32 = arith.constant 0 : i32
    %c0_i32_0 = arith.constant 0 : i32
    %c0_i32_1 = arith.constant 0 : i32
    return %arg1, %c0_i32, %c0_i32_0 : i32, i32, i32
  }
  func.func @transform_5(%arg0: i32, %arg1: i32) -> (i32, i32, i32) {
    %c0_i32 = arith.constant 0 : i32
    %c0_i32_0 = arith.constant 0 : i32
    %c0_i32_1 = arith.constant 0 : i32
    return %arg1, %c0_i32, %c0_i32_0 : i32, i32, i32
  }
  func.func @transform_6(%arg0: i32, %arg1: i32) -> (i32, i32, i32) {
    %c0_i32 = arith.constant 0 : i32
    %c0_i32_0 = arith.constant 0 : i32
    %c0_i32_1 = arith.constant 0 : i32
    return %arg1, %c0_i32, %c0_i32_0 : i32, i32, i32
  }
  func.func @transform_7(%arg0: i32, %arg1: i32) -> (i32, i32, i32) {
    %c0_i32 = arith.constant 0 : i32
    %c0_i32_0 = arith.constant 0 : i32
    %c0_i32_1 = arith.constant 0 : i32
    return %arg1, %c0_i32, %c0_i32_0 : i32, i32, i32
  }
  func.func @transform_8(%arg0: i32, %arg1: i32) -> (i32, i32) {
    %c0_i32 = arith.constant 0 : i32
    %c0_i32_0 = arith.constant 0 : i32
    return %arg0, %c0_i32 : i32, i32
  }
}

</mosaic_0001>

<llo_original>
// kernel: res_cheb_gc_diff_stack.1
$region0: #{res_cheb_gc_diff_stack.1}
  #allocation0 [shape = 'u32[]', space=smem, size = 0x4, offset = 0x4, fixed_abs, tag = 'smem constant byte address 0x4 - core index']
  #allocation1 [shape = 'u32[144,128]{1,0:T(1,128)}', space=vmem, size = 0x12000, scoped, tag = 'internal scratch']
  #allocation2 [shape = 'f32[8,512]{1,0:T(8,128)}', space=vmem, size = 0x4000, scoped, tag = 'scratch operand']
  %s0 = inlined_call_operand.vmem [shape: f32[8,512], index: 0, kind: input, shape index: {}]
  %s1 = inlined_call_operand.vmem [shape: f32[8,64], index: 1, kind: input, shape index: {}]
  %s2 = inlined_call_operand.hbm [shape: bf16[1,512,512], index: 2, kind: input, shape index: {}]
  %s3 = inlined_call_operand.vmem [shape: f32[1,1,512], index: 3, kind: input, shape index: {}]
  %s4 = inlined_call_operand.hbm [shape: bf16[1,64,512], index: 4, kind: input, shape index: {}]
  %s5 = inlined_call_operand.vmem [shape: f32[1,1,512], index: 5, kind: input, shape index: {}]
  %s6 = inlined_call_operand.hbm [shape: bf16[1,512,512], index: 6, kind: input, shape index: {}]
  %s7 = inlined_call_operand.vmem [shape: f32[1,1,512], index: 7, kind: input, shape index: {}]
  %s8 = inlined_call_operand.vmem [shape: f32[8,512], index: 8, kind: output, shape index: {}]
  %s9 = sld [smem:[#allocation0]]
  $region62: #{res_cheb_gc_diff_stack.1} parent=0
    _
  %s11 = ssub.s32 1, %s9
  %s12 = scalar_select 0, %s11, %s9
  $region1: #{res_cheb_gc_diff_stack.1} parent=0
    #allocation3 [shape = 'u8[524288]{0}', space=vmem, size = 0x80000, scoped, tag = 'input window, operand 2, single buffered']
    #allocation4 [shape = 's32[1]{0}', space=sflag, size = 0x4, scoped, tag = 'scoped memory for res_cheb_gc_diff_stack.1']
    #allocation5 [shape = 'u8[65536]{0}', space=vmem, size = 0x10000, scoped, tag = 'input window, operand 4, single buffered']
    #allocation6 [shape = 's32[1]{0}', space=sflag, size = 0x4, scoped, tag = 'scoped memory for res_cheb_gc_diff_stack.1']
    #allocation7 [shape = 'u8[524288]{0}', space=vmem, size = 0x80000, scoped, tag = 'input window, operand 6, single buffered']
    %13 = vsyncpa [#allocation4], 0
    %14 = vsyncpa [#allocation6], 0
    // Predicated region
    $region2: #{res_cheb_gc_diff_stack.1} parent=1 // pred_check
      _
    $region3: #{res_cheb_gc_diff_stack.1} parent=1 // pred_check_branch
      %16 = sbr.rel (0) target = $region5
    $region4: #{res_cheb_gc_diff_stack.1} parent=1 // pred_region
      _
    $region5: #{res_cheb_gc_diff_stack.1} parent=1 // pred_fallthru
      _
    // Predicated region
    $region6: #{res_cheb_gc_diff_stack.1} parent=1 // pred_check
      _
    $region7: #{res_cheb_gc_diff_stack.1} parent=1 // pred_check_branch
      %18 = sbr.rel (0) target = $region9
    $region8: #{res_cheb_gc_diff_stack.1} parent=1 // pred_region
      _
    $region9: #{res_cheb_gc_diff_stack.1} parent=1 // pred_fallthru
      _
    // Predicated region
    $region10: #{res_cheb_gc_diff_stack.1} parent=1 // pred_check
      _
    $region11: #{res_cheb_gc_diff_stack.1} parent=1 // pred_check_branch
      %20 = sbr.rel (0) target = $region13
    $region12: #{res_cheb_gc_diff_stack.1} parent=1 // pred_region
      %s22 = ssub.s32 16384, 16384
      %23 = vsyncadd [#allocation4], %s22
      %s24 = sshll.u32 [#allocation3], 4
      %s25 = int_to_ptr.vmem [resolvable:$true] %s24
      %30 = dma.hbm_to_vmem [thread:$0]  %s2, 16384, %s25, [#allocation4], 256, 256, 16
    $region13: #{res_cheb_gc_diff_stack.1} parent=1 // pred_fallthru
      _
    // Predicated region
    $region14: #{res_cheb_gc_diff_stack.1} parent=1 // pred_check
      _
    $region15: #{res_cheb_gc_diff_stack.1} parent=1 // pred_check_branch
      %32 = sbr.rel (0) target = $region17
    $region16: #{res_cheb_gc_diff_stack.1} parent=1 // pred_region
      _
    $region17: #{res_cheb_gc_diff_stack.1} parent=1 // pred_fallthru
      _
    // Predicated region
    $region18: #{res_cheb_gc_diff_stack.1} parent=1 // pred_check
      _
    $region19: #{res_cheb_gc_diff_stack.1} parent=1 // pred_check_branch
      %34 = sbr.rel (0) target = $region21
    $region20: #{res_cheb_gc_diff_stack.1} parent=1 // pred_region
      %s36 = ssub.s32 2048, 2048
      %37 = vsyncadd [#allocation6], %s36
      %s38 = sshll.u32 [#allocation5], 4
      %s39 = int_to_ptr.vmem [resolvable:$true] %s38
      %44 = dma.hbm_to_vmem [thread:$0]  %s4, 2048, %s39, [#allocation6], 256, 256, 16
    $region21: #{res_cheb_gc_diff_stack.1} parent=1 // pred_fallthru
      _
    // Predicated region
    $region22: #{res_cheb_gc_diff_stack.1} parent=1 // pred_check
      _
    $region23: #{res_cheb_gc_diff_stack.1} parent=1 // pred_check_branch
      %46 = sbr.rel (0) target = $region25
    $region24: #{res_cheb_gc_diff_stack.1} parent=1 // pred_region
      _
    $region25: #{res_cheb_gc_diff_stack.1} parent=1 // pred_fallthru
      _
    // Predicated region
    $region26: #{res_cheb_gc_diff_stack.1} parent=1 // pred_check
      _
    $region27: #{res_cheb_gc_diff_stack.1} parent=1 // pred_check_branch
      %48 = sbr.rel (0) target = $region29
    $region28: #{res_cheb_gc_diff_stack.1} parent=1 // pred_region
      %s50 = ssub.s32 16384, 16384
      %51 = vsyncadd [#allocation6], %s50
      %s52 = sshll.u32 [#allocation7], 4
      %s53 = int_to_ptr.vmem [resolvable:$true] %s52
      %58 = dma.hbm_to_vmem [thread:$0]  %s6, 16384, %s53, [#allocation6], 256, 256, 16
    $region29: #{res_cheb_gc_diff_stack.1} parent=1 // pred_fallthru
      _
    // Predicated region
    $region30: #{res_cheb_gc_diff_stack.1} parent=1 // pred_check
      _
    $region31: #{res_cheb_gc_diff_stack.1} parent=1 // pred_check_branch
      %60 = sbr.rel (0) target = $region33
    $region32: #{res_cheb_gc_diff_stack.1} parent=1 // pred_region
      _
    $region33: #{res_cheb_gc_diff_stack.1} parent=1 // pred_fallthru
      _
    // Predicated region
    $region34: #{res_cheb_gc_diff_stack.1} parent=1 // pred_check
      _
    $region35: #{res_cheb_gc_diff_stack.1} parent=1 // pred_check_branch
      %62 = sbr.rel (0) target = $region37
    $region36: #{res_cheb_gc_diff_stack.1} parent=1 // pred_region
      %63 = dma.done [#allocation4], 16384
    $region37: #{res_cheb_gc_diff_stack.1} parent=1 // pred_fallthru
      _
    // Predicated region
    $region38: #{res_cheb_gc_diff_stack.1} parent=1 // pred_check
      _
    $region39: #{res_cheb_gc_diff_stack.1} parent=1 // pred_check_branch
      %65 = sbr.rel (0) target = $region41
    $region40: #{res_cheb_gc_diff_stack.1} parent=1 // pred_region
      %66 = dma.done [#allocation6], 2048
    $region41: #{res_cheb_gc_diff_stack.1} parent=1 // pred_fallthru
      _
    // Predicated region
    $region42: #{res_cheb_gc_diff_stack.1} parent=1 // pred_check
      _
    $region43: #{res_cheb_gc_diff_stack.1} parent=1 // pred_check_branch
      %68 = sbr.rel (0) target = $region45
    $region44: #{res_cheb_gc_diff_stack.1} parent=1 // pred_region
      %69 = dma.done [#allocation6], 16384
    $region45: #{res_cheb_gc_diff_stack.1} parent=1 // pred_fallthru
      _
    %p71 = scmp.eq.s32.totalorder 0, 0
    // Predicated region
    $region46: #{res_cheb_gc_diff_stack.1} parent=1 // pred_check
      %p72 = pneg %p71
    $region47: #{res_cheb_gc_diff_stack.1} parent=1 // pred_check_branch
      %74 = sbr.rel (%p72) target = $region49
    $region48: #{res_cheb_gc_diff_stack.1} parent=1 // pred_region
      %v75 = vld [vmem:[%s0] sm:$0xff]
      %v76 = vld [vmem:[%s0 + $0x8] sm:$0xff]
      %v77 = vld [vmem:[%s0 + $0x10] sm:$0xff]
      %v78 = vld [vmem:[%s0 + $0x18] sm:$0xff]
      %79 = vst [vmem:[#allocation2] sm:$0xff] %v75
      %80 = vst [vmem:[#allocation2 + $0x8] sm:$0xff] %v76
      %81 = vst [vmem:[#allocation2 + $0x10] sm:$0xff] %v77
      %82 = vst [vmem:[#allocation2 + $0x18] sm:$0xff] %v78
    $region49: #{res_cheb_gc_diff_stack.1} parent=1 // pred_fallthru
      _
    %v83 = vld [vmem:[#allocation2] sm:$0xff]
    %v84 = vld [vmem:[#allocation2 + $0x8] sm:$0xff]
    %v85 = vld [vmem:[#allocation2 + $0x10] sm:$0xff]
    %v86 = vld [vmem:[#allocation2 + $0x18] sm:$0xff]
    %v87 = vld [vmem:[%s1] sm:$0xff]
    %v88 = vxor.u32 %v87, 2147483648
    %v89 = vmul.f32 %v88, 1.442695
    %v90 = vpow.pop %v89
    %v91 = vadd.f32 %v90, 1.0
    %v92 = vrcp.pop %v91
    %v93 = vmul.f32 1.0, %v92
    %v94 = vmul.f32 %v87, %v93
    %v95 = vpack.c.bf16 %v94, %v94
    %v96 = vpack.c.bf16 %v83, %v83
    %v97 = vpack.c.bf16 %v84, %v84
    %v98 = vpack.c.bf16 %v85, %v85
    %v99 = vpack.c.bf16 %v86, %v86
    %v100 = vld [vmem:[#allocation3] sm:$0xff]
    %v101 = vld [vmem:[#allocation3 + $0x8] sm:$0xff]
    %v102 = vld [vmem:[#allocation3 + $0x10] sm:$0xff]
    %v103 = vld [vmem:[#allocation3 + $0x18] sm:$0xff]
    %v104 = vld [vmem:[#allocation3 + $0x20] sm:$0xff]
    %v105 = vld [vmem:[#allocation3 + $0x28] sm:$0xff]
    %v106 = vld [vmem:[#allocation3 + $0x30] sm:$0xff]
    %v107 = vld [vmem:[#allocation3 + $0x38] sm:$0xff]
    %v108 = vld [vmem:[#allocation3 + $0x40] sm:$0xff]
    %v109 = vld [vmem:[#allocation3 + $0x48] sm:$0xff]
    %v110 = vld [vmem:[#allocation3 + $0x50] sm:$0xff]
    %v111 = vld [vmem:[#allocation3 + $0x58] sm:$0xff]
    %v112 = vld [vmem:[#allocation3 + $0x60] sm:$0xff]
    %v113 = vld [vmem:[#allocation3 + $0x68] sm:$0xff]
    %v114 = vld [vmem:[#allocation3 + $0x70] sm:$0xff]
    %v115 = vld [vmem:[#allocation3 + $0x78] sm:$0xff]
    %v116 = vld [vmem:[#allocation3 + $0x80] sm:$0xff]
    %v117 = vld [vmem:[#allocation3 + $0x88] sm:$0xff]
    %v118 = vld [vmem:[#allocation3 + $0x90] sm:$0xff]
    %v119 = vld [vmem:[#allocation3 + $0x98] sm:$0xff]
    %v120 = vld [vmem:[#allocation3 + $0xa0] sm:$0xff]
    %v121 = vld [vmem:[#allocation3 + $0xa8] sm:$0xff]
    %v122 = vld [vmem:[#allocation3 + $0xb0] sm:$0xff]
    %v123 = vld [vmem:[#allocation3 + $0xb8] sm:$0xff]
    %v124 = vld [vmem:[#allocation3 + $0xc0] sm:$0xff]
    %v125 = vld [vmem:[#allocation3 + $0xc8] sm:$0xff]
    %v126 = vld [vmem:[#allocation3 + $0xd0] sm:$0xff]
    %v127 = vld [vmem:[#allocation3 + $0xd8] sm:$0xff]
    %v128 = vld [vmem:[#allocation3 + $0xe0] sm:$0xff]
    %v129 = vld [vmem:[#allocation3 + $0xe8] sm:$0xff]
    %v130 = vld [vmem:[#allocation3 + $0xf0] sm:$0xff]
    %v131 = vld [vmem:[#allocation3 + $0xf8] sm:$0xff]
    %v132 = vld [vmem:[#allocation3 + $0x100] sm:$0xff]
    %v133 = vld [vmem:[#allocation3 + $0x108] sm:$0xff]
    %v134 = vld [vmem:[#allocation3 + $0x110] sm:$0xff]
    %v135 = vld [vmem:[#allocation3 + $0x118] sm:$0xff]
    %v136 = vld [vmem:[#allocation3 + $0x120] sm:$0xff]
    %v137 = vld [vmem:[#allocation3 + $0x128] sm:$0xff]
    %v138 = vld [vmem:[#allocation3 + $0x130] sm:$0xff]
    %v139 = vld [vmem:[#allocation3 + $0x138] sm:$0xff]
    %v140 = vld [vmem:[#allocation3 + $0x140] sm:$0xff]
    %v141 = vld [vmem:[#allocation3 + $0x148] sm:$0xff]
    %v142 = vld [vmem:[#allocation3 + $0x150] sm:$0xff]
    %v143 = vld [vmem:[#allocation3 + $0x158] sm:$0xff]
    %v144 = vld [vmem:[#allocation3 + $0x160] sm:$0xff]
    %v145 = vld [vmem:[#allocation3 + $0x168] sm:$0xff]
    %v146 = vld [vmem:[#allocation3 + $0x170] sm:$0xff]
    %v147 = vld [vmem:[#allocation3 + $0x178] sm:$0xff]
    %v148 = vld [vmem:[#allocation3 + $0x180] sm:$0xff]
    %v149 = vld [vmem:[#allocation3 + $0x188] sm:$0xff]
    %v150 = vld [vmem:[#allocation3 + $0x190] sm:$0xff]
    %v151 = vld [vmem:[#allocation3 + $0x198] sm:$0xff]
    %v152 = vld [vmem:[#allocation3 + $0x1a0] sm:$0xff]
    %v153 = vld [vmem:[#allocation3 + $0x1a8] sm:$0xff]
    %v154 = vld [vmem:[#allocation3 + $0x1b0] sm:$0xff]
    %v155 = vld [vmem:[#allocation3 + $0x1b8] sm:$0xff]
    %v156 = vld [vmem:[#allocation3 + $0x1c0] sm:$0xff]
    %v157 = vld [vmem:[#allocation3 + $0x1c8] sm:$0xff]
    %v158 = vld [vmem:[#allocation3 + $0x1d0] sm:$0xff]
    %v159 = vld [vmem:[#allocation3 + $0x1d8] sm:$0xff]
    %v160 = vld [vmem:[#allocation3 + $0x1e0] sm:$0xff]
    %v161 = vld [vmem:[#allocation3 + $0x1e8] sm:$0xff]
    %v162 = vld [vmem:[#allocation3 + $0x1f0] sm:$0xff]
    %v163 = vld [vmem:[#allocation3 + $0x1f8] sm:$0xff]
    %v164 = vld [vmem:[#allocation3 + $0x200] sm:$0xff]
    %v165 = vld [vmem:[#allocation3 + $0x208] sm:$0xff]
    %v166 = vld [vmem:[#allocation3 + $0x210] sm:$0xff]
    %v167 = vld [vmem:[#allocation3 + $0x218] sm:$0xff]
    %v168 = vld [vmem:[#allocation3 + $0x220] sm:$0xff]
    %v169 = vld [vmem:[#allocation3 + $0x228] sm:$0xff]
    %v170 = vld [vmem:[#allocation3 + $0x230] sm:$0xff]
    %v171 = vld [vmem:[#allocation3 + $0x238] sm:$0xff]
    %v172 = vld [vmem:[#allocation3 + $0x240] sm:$0xff]
    %v173 = vld [vmem:[#allocation3 + $0x248] sm:$0xff]
    %v174 = vld [vmem:[#allocation3 + $0x250] sm:$0xff]
    %v175 = vld [vmem:[#allocation3 + $0x258] sm:$0xff]
    %v176 = vld [vmem:[#allocation3 + $0x260] sm:$0xff]
    %v177 = vld [vmem:[#allocation3 + $0x268] sm:$0xff]
    %v178 = vld [vmem:[#allocation3 + $0x270] sm:$0xff]
    %v179 = vld [vmem:[#allocation3 + $0x278] sm:$0xff]
    %v180 = vld [vmem:[#allocation3 + $0x280] sm:$0xff]
    %v181 = vld [vmem:[#allocation3 + $0x288] sm:$0xff]
    %v182 = vld [vmem:[#allocation3 + $0x290] sm:$0xff]
    %v183 = vld [vmem:[#allocation3 + $0x298] sm:$0xff]
    %v184 = vld [vmem:[#allocation3 + $0x2a0] sm:$0xff]
    %v185 = vld [vmem:[#allocation3 + $0x2a8] sm:$0xff]
    %v186 = vld [vmem:[#allocation3 + $0x2b0] sm:$0xff]
    %v187 = vld [vmem:[#allocation3 + $0x2b8] sm:$0xff]
    %v188 = vld [vmem:[#allocation3 + $0x2c0] sm:$0xff]
    %v189 = vld [vmem:[#allocation3 + $0x2c8] sm:$0xff]
    %v190 = vld [vmem:[#allocation3 + $0x2d0] sm:$0xff]
    %v191 = vld [vmem:[#allocation3 + $0x2d8] sm:$0xff]
    %v192 = vld [vmem:[#allocation3 + $0x2e0] sm:$0xff]
    %v193 = vld [vmem:[#allocation3 + $0x2e8] sm:$0xff]
    %v194 = vld [vmem:[#allocation3 + $0x2f0] sm:$0xff]
    %v195 = vld [vmem:[#allocation3 + $0x2f8] sm:$0xff]
    %v196 = vld [vmem:[#allocation3 + $0x300] sm:$0xff]
    %v197 = vld [vmem:[#allocation3 + $0x308] sm:$0xff]
    %v198 = vld [vmem:[#allocation3 + $0x310] sm:$0xff]
    %v199 = vld [vmem:[#allocation3 + $0x318] sm:$0xff]
    %v200 = vld [vmem:[#allocation3 + $0x320] sm:$0xff]
    %v201 = vld [vmem:[#allocation3 + $0x328] sm:$0xff]
    %v202 = vld [vmem:[#allocation3 + $0x330] sm:$0xff]
    %v203 = vld [vmem:[#allocation3 + $0x338] sm:$0xff]
    %v204 = vld [vmem:[#allocation3 + $0x340] sm:$0xff]
    %v205 = vld [vmem:[#allocation3 + $0x348] sm:$0xff]
    %v206 = vld [vmem:[#allocation3 + $0x350] sm:$0xff]
    %v207 = vld [vmem:[#allocation3 + $0x358] sm:$0xff]
    %v208 = vld [vmem:[#allocation3 + $0x360] sm:$0xff]
    %v209 = vld [vmem:[#allocation3 + $0x368] sm:$0xff]
    %v210 = vld [vmem:[#allocation3 + $0x370] sm:$0xff]
    %v211 = vld [vmem:[#allocation3 + $0x378] sm:$0xff]
    %v212 = vld [vmem:[#allocation3 + $0x380] sm:$0xff]
    %v213 = vld [vmem:[#allocation3 + $0x388] sm:$0xff]
    %v214 = vld [vmem:[#allocation3 + $0x390] sm:$0xff]
    %v215 = vld [vmem:[#allocation3 + $0x398] sm:$0xff]
    %v216 = vld [vmem:[#allocation3 + $0x3a0] sm:$0xff]
    %v217 = vld [vmem:[#allocation3 + $0x3a8] sm:$0xff]
    %v218 = vld [vmem:[#allocation3 + $0x3b0] sm:$0xff]
    %v219 = vld [vmem:[#allocation3 + $0x3b8] sm:$0xff]
    %v220 = vld [vmem:[#allocation3 + $0x3c0] sm:$0xff]
    %v221 = vld [vmem:[#allocation3 + $0x3c8] sm:$0xff]
    %v222 = vld [vmem:[#allocation3 + $0x3d0] sm:$0xff]
    %v223 = vld [vmem:[#allocation3 + $0x3d8] sm:$0xff]
    %v224 = vld [vmem:[#allocation3 + $0x3e0] sm:$0xff]
    %v225 = vld [vmem:[#allocation3 + $0x3e8] sm:$0xff]
    %v226 = vld [vmem:[#allocation3 + $0x3f0] sm:$0xff]
    %v227 = vld [vmem:[#allocation3 + $0x3f8] sm:$0xff]
    %v228 = vld [vmem:[%s3] sm:$0xf]
    %v230 = vlaneseq
    %v231 = vshrl.u32 %v230, 7
    %v232 = vsub.s32 0, %v231
    %v233 = vrot.slane %v228, %v232
    %v234 = vlaneseq
    %v235 = vshrl.u32 %v234, 7
    %v236 = vsub.s32 1, %v235
    %v237 = vrot.slane %v228, %v236
    %v238 = vlaneseq
    %v239 = vshrl.u32 %v238, 7
    %v240 = vsub.s32 2, %v239
    %v241 = vrot.slane %v228, %v240
    %v242 = vlaneseq
    %v243 = vshrl.u32 %v242, 7
    %v244 = vsub.s32 3, %v243
    %v245 = vrot.slane %v228, %v244
    %v378 = vunpack.c.l.b16 %v100
    %v379 = vunpack.c.h.b16 %v100
    %v380 = vunpack.c.l.b16 %v101
    %v381 = vunpack.c.h.b16 %v101
    %v382 = vunpack.c.l.b16 %v102
    %v383 = vunpack.c.h.b16 %v102
    %v384 = vunpack.c.l.b16 %v103
    %v385 = vunpack.c.h.b16 %v103
    %v386 = vunpack.c.l.b16 %v104
    %v387 = vunpack.c.h.b16 %v104
    %v388 = vunpack.c.l.b16 %v105
    %v389 = vunpack.c.h.b16 %v105
    %v390 = vunpack.c.l.b16 %v106
    %v391 = vunpack.c.h.b16 %v106
    %v392 = vunpack.c.l.b16 %v107
    %v393 = vunpack.c.h.b16 %v107
    %v394 = vunpack.c.l.b16 %v108
    %v395 = vunpack.c.h.b16 %v108
    %v396 = vunpack.c.l.b16 %v109
    %v397 = vunpack.c.h.b16 %v109
    %v398 = vunpack.c.l.b16 %v110
    %v399 = vunpack.c.h.b16 %v110
    %v400 = vunpack.c.l.b16 %v111
    %v401 = vunpack.c.h.b16 %v111
    %v402 = vunpack.c.l.b16 %v112
    %v403 = vunpack.c.h.b16 %v112
    %v404 = vunpack.c.l.b16 %v113
    %v405 = vunpack.c.h.b16 %v113
    %v406 = vunpack.c.l.b16 %v114
    %v407 = vunpack.c.h.b16 %v114
    %v408 = vunpack.c.l.b16 %v115
    %v409 = vunpack.c.h.b16 %v115
    %v410 = vunpack.c.l.b16 %v116
    %v411 = vunpack.c.h.b16 %v116
    %v412 = vunpack.c.l.b16 %v117
    %v413 = vunpack.c.h.b16 %v117
    %v414 = vunpack.c.l.b16 %v118
    %v415 = vunpack.c.h.b16 %v118
    %v416 = vunpack.c.l.b16 %v119
    %v417 = vunpack.c.h.b16 %v119
    %v418 = vunpack.c.l.b16 %v120
    %v419 = vunpack.c.h.b16 %v120
    %v420 = vunpack.c.l.b16 %v121
    %v421 = vunpack.c.h.b16 %v121
    %v422 = vunpack.c.l.b16 %v122
    %v423 = vunpack.c.h.b16 %v122
    %v424 = vunpack.c.l.b16 %v123
    %v425 = vunpack.c.h.b16 %v123
    %v426 = vunpack.c.l.b16 %v124
    %v427 = vunpack.c.h.b16 %v124
    %v428 = vunpack.c.l.b16 %v125
    %v429 = vunpack.c.h.b16 %v125
    %v430 = vunpack.c.l.b16 %v126
    %v431 = vunpack.c.h.b16 %v126
    %v432 = vunpack.c.l.b16 %v127
    %v433 = vunpack.c.h.b16 %v127
    %v434 = vunpack.c.l.b16 %v128
    %v435 = vunpack.c.h.b16 %v128
    %v436 = vunpack.c.l.b16 %v129
    %v437 = vunpack.c.h.b16 %v129
    %v438 = vunpack.c.l.b16 %v130
    %v439 = vunpack.c.h.b16 %v130
    %v440 = vunpack.c.l.b16 %v131
    %v441 = vunpack.c.h.b16 %v131
    %v442 = vunpack.c.l.b16 %v132
    %v443 = vunpack.c.h.b16 %v132
    %v444 = vunpack.c.l.b16 %v133
    %v445 = vunpack.c.h.b16 %v133
    %v446 = vunpack.c.l.b16 %v134
    %v447 = vunpack.c.h.b16 %v134
    %v448 = vunpack.c.l.b16 %v135
    %v449 = vunpack.c.h.b16 %v135
    %v450 = vunpack.c.l.b16 %v136
    %v451 = vunpack.c.h.b16 %v136
    %v452 = vunpack.c.l.b16 %v137
    %v453 = vunpack.c.h.b16 %v137
    %v454 = vunpack.c.l.b16 %v138
    %v455 = vunpack.c.h.b16 %v138
    %v456 = vunpack.c.l.b16 %v139
    %v457 = vunpack.c.h.b16 %v139
    %v458 = vunpack.c.l.b16 %v140
    %v459 = vunpack.c.h.b16 %v140
    %v460 = vunpack.c.l.b16 %v141
    %v461 = vunpack.c.h.b16 %v141
    %v462 = vunpack.c.l.b16 %v142
    %v463 = vunpack.c.h.b16 %v142
    %v464 = vunpack.c.l.b16 %v143
    %v465 = vunpack.c.h.b16 %v143
    %v466 = vunpack.c.l.b16 %v144
    %v467 = vunpack.c.h.b16 %v144
    %v468 = vunpack.c.l.b16 %v145
    %v469 = vunpack.c.h.b16 %v145
    %v470 = vunpack.c.l.b16 %v146
    %v471 = vunpack.c.h.b16 %v146
    %v472 = vunpack.c.l.b16 %v147
    %v473 = vunpack.c.h.b16 %v147
    %v474 = vunpack.c.l.b16 %v148
    %v475 = vunpack.c.h.b16 %v148
    %v476 = vunpack.c.l.b16 %v149
    %v477 = vunpack.c.h.b16 %v149
    %v478 = vunpack.c.l.b16 %v150
    %v479 = vunpack.c.h.b16 %v150
    %v480 = vunpack.c.l.b16 %v151
    %v481 = vunpack.c.h.b16 %v151
    %v482 = vunpack.c.l.b16 %v152
    %v483 = vunpack.c.h.b16 %v152
    %v484 = vunpack.c.l.b16 %v153
    %v485 = vunpack.c.h.b16 %v153
    %v486 = vunpack.c.l.b16 %v154
    %v487 = vunpack.c.h.b16 %v154
    %v488 = vunpack.c.l.b16 %v155
    %v489 = vunpack.c.h.b16 %v155
    %v490 = vunpack.c.l.b16 %v156
    %v491 = vunpack.c.h.b16 %v156
    %v492 = vunpack.c.l.b16 %v157
    %v493 = vunpack.c.h.b16 %v157
    %v494 = vunpack.c.l.b16 %v158
    %v495 = vunpack.c.h.b16 %v158
    %v496 = vunpack.c.l.b16 %v159
    %v497 = vunpack.c.h.b16 %v159
    %v498 = vunpack.c.l.b16 %v160
    %v499 = vunpack.c.h.b16 %v160
    %v500 = vunpack.c.l.b16 %v161
    %v501 = vunpack.c.h.b16 %v161
    %v502 = vunpack.c.l.b16 %v162
    %v503 = vunpack.c.h.b16 %v162
    %v504 = vunpack.c.l.b16 %v163
    %v505 = vunpack.c.h.b16 %v163
    %v506 = vunpack.c.l.b16 %v164
    %v507 = vunpack.c.h.b16 %v164
    %v508 = vunpack.c.l.b16 %v165
    %v509 = vunpack.c.h.b16 %v165
    %v510 = vunpack.c.l.b16 %v166
    %v511 = vunpack.c.h.b16 %v166
    %v512 = vunpack.c.l.b16 %v167
    %v513 = vunpack.c.h.b16 %v167
    %v514 = vunpack.c.l.b16 %v168
    %v515 = vunpack.c.h.b16 %v168
    %v516 = vunpack.c.l.b16 %v169
    %v517 = vunpack.c.h.b16 %v169
    %v518 = vunpack.c.l.b16 %v170
    %v519 = vunpack.c.h.b16 %v170
    %v520 = vunpack.c.l.b16 %v171
    %v521 = vunpack.c.h.b16 %v171
    %v522 = vunpack.c.l.b16 %v172
    %v523 = vunpack.c.h.b16 %v172
    %v524 = vunpack.c.l.b16 %v173
    %v525 = vunpack.c.h.b16 %v173
    %v526 = vunpack.c.l.b16 %v174
    %v527 = vunpack.c.h.b16 %v174
    %v528 = vunpack.c.l.b16 %v175
    %v529 = vunpack.c.h.b16 %v175
    %v530 = vunpack.c.l.b16 %v176
    %v531 = vunpack.c.h.b16 %v176
    %v532 = vunpack.c.l.b16 %v177
    %v533 = vunpack.c.h.b16 %v177
    %v534 = vunpack.c.l.b16 %v178
    %v535 = vunpack.c.h.b16 %v178
    %v536 = vunpack.c.l.b16 %v179
    %v537 = vunpack.c.h.b16 %v179
    %v538 = vunpack.c.l.b16 %v180
    %v539 = vunpack.c.h.b16 %v180
    %v540 = vunpack.c.l.b16 %v181
    %v541 = vunpack.c.h.b16 %v181
    %v542 = vunpack.c.l.b16 %v182
    %v543 = vunpack.c.h.b16 %v182
    %v544 = vunpack.c.l.b16 %v183
    %v545 = vunpack.c.h.b16 %v183
    %v546 = vunpack.c.l.b16 %v184
    %v547 = vunpack.c.h.b16 %v184
    %v548 = vunpack.c.l.b16 %v185
    %v549 = vunpack.c.h.b16 %v185
    %v550 = vunpack.c.l.b16 %v186
    %v551 = vunpack.c.h.b16 %v186
    %v552 = vunpack.c.l.b16 %v187
    %v553 = vunpack.c.h.b16 %v187
    %v554 = vunpack.c.l.b16 %v188
    %v555 = vunpack.c.h.b16 %v188
    %v556 = vunpack.c.l.b16 %v189
    %v557 = vunpack.c.h.b16 %v189
    %v558 = vunpack.c.l.b16 %v190
    %v559 = vunpack.c.h.b16 %v190
    %v560 = vunpack.c.l.b16 %v191
    %v561 = vunpack.c.h.b16 %v191
    %v562 = vunpack.c.l.b16 %v192
    %v563 = vunpack.c.h.b16 %v192
    %v564 = vunpack.c.l.b16 %v193
    %v565 = vunpack.c.h.b16 %v193
    %v566 = vunpack.c.l.b16 %v194
    %v567 = vunpack.c.h.b16 %v194
    %v568 = vunpack.c.l.b16 %v195
    %v569 = vunpack.c.h.b16 %v195
    %v570 = vunpack.c.l.b16 %v196
    %v571 = vunpack.c.h.b16 %v196
    %v572 = vunpack.c.l.b16 %v197
    %v573 = vunpack.c.h.b16 %v197
    %v574 = vunpack.c.l.b16 %v198
    %v575 = vunpack.c.h.b16 %v198
    %v576 = vunpack.c.l.b16 %v199
    %v577 = vunpack.c.h.b16 %v199
    %v578 = vunpack.c.l.b16 %v200
    %v579 = vunpack.c.h.b16 %v200
    %v580 = vunpack.c.l.b16 %v201
    %v581 = vunpack.c.h.b16 %v201
    %v582 = vunpack.c.l.b16 %v202
    %v583 = vunpack.c.h.b16 %v202
    %v584 = vunpack.c.l.b16 %v203
    %v585 = vunpack.c.h.b16 %v203
    %v586 = vunpack.c.l.b16 %v204
    %v587 = vunpack.c.h.b16 %v204
    %v588 = vunpack.c.l.b16 %v205
    %v589 = vunpack.c.h.b16 %v205
    %v590 = vunpack.c.l.b16 %v206
    %v591 = vunpack.c.h.b16 %v206
    %v592 = vunpack.c.l.b16 %v207
    %v593 = vunpack.c.h.b16 %v207
    %v594 = vunpack.c.l.b16 %v208
    %v595 = vunpack.c.h.b16 %v208
    %v596 = vunpack.c.l.b16 %v209
    %v597 = vunpack.c.h.b16 %v209
    %v598 = vunpack.c.l.b16 %v210
    %v599 = vunpack.c.h.b16 %v210
    %v600 = vunpack.c.l.b16 %v211
    %v601 = vunpack.c.h.b16 %v211
    %v602 = vunpack.c.l.b16 %v212
    %v603 = vunpack.c.h.b16 %v212
    %v604 = vunpack.c.l.b16 %v213
    %v605 = vunpack.c.h.b16 %v213
    %v606 = vunpack.c.l.b16 %v214
    %v607 = vunpack.c.h.b16 %v214
    %v608 = vunpack.c.l.b16 %v215
    %v609 = vunpack.c.h.b16 %v215
    %v610 = vunpack.c.l.b16 %v216
    %v611 = vunpack.c.h.b16 %v216
    %v612 = vunpack.c.l.b16 %v217
    %v613 = vunpack.c.h.b16 %v217
    %v614 = vunpack.c.l.b16 %v218
    %v615 = vunpack.c.h.b16 %v218
    %v616 = vunpack.c.l.b16 %v219
    %v617 = vunpack.c.h.b16 %v219
    %v618 = vunpack.c.l.b16 %v220
    %v619 = vunpack.c.h.b16 %v220
    %v620 = vunpack.c.l.b16 %v221
    %v621 = vunpack.c.h.b16 %v221
    %v622 = vunpack.c.l.b16 %v222
    %v623 = vunpack.c.h.b16 %v222
    %v624 = vunpack.c.l.b16 %v223
    %v625 = vunpack.c.h.b16 %v223
    %v626 = vunpack.c.l.b16 %v224
    %v627 = vunpack.c.h.b16 %v224
    %v628 = vunpack.c.l.b16 %v225
    %v629 = vunpack.c.h.b16 %v225
    %v630 = vunpack.c.l.b16 %v226
    %v631 = vunpack.c.h.b16 %v226
    %v632 = vunpack.c.l.b16 %v227
    %v633 = vunpack.c.h.b16 %v227
    %v634 = vpack.c.b16 %v382, %v378
    %v635 = vpack.c.b16 %v383, %v379
    %v636 = vpack.c.b16 %v384, %v380
    %v637 = vpack.c.b16 %v385, %v381
    %v638 = vpack.c.b16 %v390, %v386
    %v639 = vpack.c.b16 %v391, %v387
    %v640 = vpack.c.b16 %v392, %v388
    %v641 = vpack.c.b16 %v393, %v389
    %v642 = vpack.c.b16 %v398, %v394
    %v643 = vpack.c.b16 %v399, %v395
    %v644 = vpack.c.b16 %v400, %v396
    %v645 = vpack.c.b16 %v401, %v397
    %v646 = vpack.c.b16 %v406, %v402
    %v647 = vpack.c.b16 %v407, %v403
    %v648 = vpack.c.b16 %v408, %v404
    %v649 = vpack.c.b16 %v409, %v405
    %v650 = vpack.c.b16 %v414, %v410
    %v651 = vpack.c.b16 %v415, %v411
    %v652 = vpack.c.b16 %v416, %v412
    %v653 = vpack.c.b16 %v417, %v413
    %v654 = vpack.c.b16 %v422, %v418
    %v655 = vpack.c.b16 %v423, %v419
    %v656 = vpack.c.b16 %v424, %v420
    %v657 = vpack.c.b16 %v425, %v421
    %v658 = vpack.c.b16 %v430, %v426
    %v659 = vpack.c.b16 %v431, %v427
    %v660 = vpack.c.b16 %v432, %v428
    %v661 = vpack.c.b16 %v433, %v429
    %v662 = vpack.c.b16 %v438, %v434
    %v663 = vpack.c.b16 %v439, %v435
    %v664 = vpack.c.b16 %v440, %v436
    %v665 = vpack.c.b16 %v441, %v437
    %v666 = vpack.c.b16 %v446, %v442
    %v667 = vpack.c.b16 %v447, %v443
    %v668 = vpack.c.b16 %v448, %v444
    %v669 = vpack.c.b16 %v449, %v445
    %v670 = vpack.c.b16 %v454, %v450
    %v671 = vpack.c.b16 %v455, %v451
    %v672 = vpack.c.b16 %v456, %v452
    %v673 = vpack.c.b16 %v457, %v453
    %v674 = vpack.c.b16 %v462, %v458
    %v675 = vpack.c.b16 %v463, %v459
    %v676 = vpack.c.b16 %v464, %v460
    %v677 = vpack.c.b16 %v465, %v461
    %v678 = vpack.c.b16 %v470, %v466
    %v679 = vpack.c.b16 %v471, %v467
    %v680 = vpack.c.b16 %v472, %v468
    %v681 = vpack.c.b16 %v473, %v469
    %v682 = vpack.c.b16 %v478, %v474
    %v683 = vpack.c.b16 %v479, %v475
    %v684 = vpack.c.b16 %v480, %v476
    %v685 = vpack.c.b16 %v481, %v477
    %v686 = vpack.c.b16 %v486, %v482
    %v687 = vpack.c.b16 %v487, %v483
    %v688 = vpack.c.b16 %v488, %v484
    %v689 = vpack.c.b16 %v489, %v485
    %v690 = vpack.c.b16 %v494, %v490
    %v691 = vpack.c.b16 %v495, %v491
    %v692 = vpack.c.b16 %v496, %v492
    %v693 = vpack.c.b16 %v497, %v493
    %v694 = vpack.c.b16 %v502, %v498
    %v695 = vpack.c.b16 %v503, %v499
    %v696 = vpack.c.b16 %v504, %v500
    %v697 = vpack.c.b16 %v505, %v501
    %v698 = vpack.c.b16 %v510, %v506
    %v699 = vpack.c.b16 %v511, %v507
    %v700 = vpack.c.b16 %v512, %v508
    %v701 = vpack.c.b16 %v513, %v509
    %v702 = vpack.c.b16 %v518, %v514
    %v703 = vpack.c.b16 %v519, %v515
    %v704 = vpack.c.b16 %v520, %v516
    %v705 = vpack.c.b16 %v521, %v517
    %v706 = vpack.c.b16 %v526, %v522
    %v707 = vpack.c.b16 %v527, %v523
    %v708 = vpack.c.b16 %v528, %v524
    %v709 = vpack.c.b16 %v529, %v525
    %v710 = vpack.c.b16 %v534, %v530
    %v711 = vpack.c.b16 %v535, %v531
    %v712 = vpack.c.b16 %v536, %v532
    %v713 = vpack.c.b16 %v537, %v533
    %v714 = vpack.c.b16 %v542, %v538
    %v715 = vpack.c.b16 %v543, %v539
    %v716 = vpack.c.b16 %v544, %v540
    %v717 = vpack.c.b16 %v545, %v541
    %v718 = vpack.c.b16 %v550, %v546
    %v719 = vpack.c.b16 %v551, %v547
    %v720 = vpack.c.b16 %v552, %v548
    %v721 = vpack.c.b16 %v553, %v549
    %v722 = vpack.c.b16 %v558, %v554
    %v723 = vpack.c.b16 %v559, %v555
    %v724 = vpack.c.b16 %v560, %v556
    %v725 = vpack.c.b16 %v561, %v557
    %v726 = vpack.c.b16 %v566, %v562
    %v727 = vpack.c.b16 %v567, %v563
    %v728 = vpack.c.b16 %v568, %v564
    %v729 = vpack.c.b16 %v569, %v565
    %v730 = vpack.c.b16 %v574, %v570
    %v731 = vpack.c.b16 %v575, %v571
    %v732 = vpack.c.b16 %v576, %v572
    %v733 = vpack.c.b16 %v577, %v573
    %v734 = vpack.c.b16 %v582, %v578
    %v735 = vpack.c.b16 %v583, %v579
    %v736 = vpack.c.b16 %v584, %v580
    %v737 = vpack.c.b16 %v585, %v581
    %v738 = vpack.c.b16 %v590, %v586
    %v739 = vpack.c.b16 %v591, %v587
    %v740 = vpack.c.b16 %v592, %v588
    %v741 = vpack.c.b16 %v593, %v589
    %v742 = vpack.c.b16 %v598, %v594
    %v743 = vpack.c.b16 %v599, %v595
    %v744 = vpack.c.b16 %v600, %v596
    %v745 = vpack.c.b16 %v601, %v597
    %v746 = vpack.c.b16 %v606, %v602
    %v747 = vpack.c.b16 %v607, %v603
    %v748 = vpack.c.b16 %v608, %v604
    %v749 = vpack.c.b16 %v609, %v605
    %v750 = vpack.c.b16 %v614, %v610
    %v751 = vpack.c.b16 %v615, %v611
    %v752 = vpack.c.b16 %v616, %v612
    %v753 = vpack.c.b16 %v617, %v613
    %v754 = vpack.c.b16 %v622, %v618
    %v755 = vpack.c.b16 %v623, %v619
    %v756 = vpack.c.b16 %v624, %v620
    %v757 = vpack.c.b16 %v625, %v621
    %v758 = vpack.c.b16 %v630, %v626
    %v759 = vpack.c.b16 %v631, %v627
    %v760 = vpack.c.b16 %v632, %v628
    %v761 = vpack.c.b16 %v633, %v629
    %890 = vmatprep.subr.bf16.mxu0 %v663
    %891 = vmatpush1.bf16.msra.mxu0 %v662
    %892 = vmatprep.subr.bf16.mxu0 %v659
    %893 = vmatpush1.bf16.msra.mxu0 %v658
    %894 = vmatprep.subr.bf16.mxu0 %v655
    %895 = vmatpush1.bf16.msra.mxu0 %v654
    %896 = vmatprep.subr.bf16.mxu0 %v651
    %897 = vmatpush1.bf16.msra.mxu0 %v650
    %898 = vmatprep.subr.bf16.mxu0 %v647
    %899 = vmatpush1.bf16.msra.mxu0 %v646
    %900 = vmatprep.subr.bf16.mxu0 %v643
    %901 = vmatpush1.bf16.msra.mxu0 %v642
    %902 = vmatprep.subr.bf16.mxu0 %v639
    %903 = vmatpush1.bf16.msra.mxu0 %v638
    %904 = vmatprep.subr.bf16.mxu0 %v635
    %905 = vmatpush1.bf16.msra.mxu0 %v634
    %906 = vmatprep.subr.bf16.mxu0 %v695
    %907 = vmatpush2.bf16.msra.mxu0 %v694
    %908 = vmatprep.subr.bf16.mxu0 %v691
    %909 = vmatpush2.bf16.msra.mxu0 %v690
    %910 = vmatprep.subr.bf16.mxu0 %v687
    %911 = vmatpush2.bf16.msra.mxu0 %v686
    %912 = vmatprep.subr.bf16.mxu0 %v683
    %913 = vmatpush2.bf16.msra.mxu0 %v682
    %914 = vmatprep.subr.bf16.mxu0 %v679
    %915 = vmatpush2.bf16.msra.mxu0 %v678
    %916 = vmatprep.subr.bf16.mxu0 %v675
    %917 = vmatpush2.bf16.msra.mxu0 %v674
    %918 = vmatprep.subr.bf16.mxu0 %v671
    %919 = vmatpush2.bf16.msra.mxu0 %v670
    %920 = vmatprep.subr.bf16.mxu0 %v667
    %921 = vmatpush2.bf16.msra.mxu0 %v666
    %922 = vmatprep.mubr.bf16.mxu0 %v97
    %923 = vmatmul.mubr.bf16.gmra.mxu0 %v96
    %v924 = vpop.f32.mrf.mxu0
    %v925 = vadd.f32 %v233, %v924
    %v926 = vpop.f32.mrf.mxu0
    %v927 = vadd.f32 %v237, %v926
    %v928 = vpop.f32.mrf.mxu0
    %v929 = vpop.f32.mrf.mxu0
    %930 = vdwg.mxu0
    %931 = vmatprep.subr.bf16.mxu0 %v727
    %932 = vmatpush1.bf16.msra.mxu0 %v726
    %933 = vmatprep.subr.bf16.mxu0 %v723
    %934 = vmatpush1.bf16.msra.mxu0 %v722
    %935 = vmatprep.subr.bf16.mxu0 %v719
    %936 = vmatpush1.bf16.msra.mxu0 %v718
    %937 = vmatprep.subr.bf16.mxu0 %v715
    %938 = vmatpush1.bf16.msra.mxu0 %v714
    %939 = vmatprep.subr.bf16.mxu0 %v711
    %940 = vmatpush1.bf16.msra.mxu0 %v710
    %941 = vmatprep.subr.bf16.mxu0 %v707
    %942 = vmatpush1.bf16.msra.mxu0 %v706
    %943 = vmatprep.subr.bf16.mxu0 %v703
    %944 = vmatpush1.bf16.msra.mxu0 %v702
    %945 = vmatprep.subr.bf16.mxu0 %v699
    %946 = vmatpush1.bf16.msra.mxu0 %v698
    %947 = vmatprep.subr.bf16.mxu0 %v759
    %948 = vmatpush2.bf16.msra.mxu0 %v758
    %949 = vmatprep.subr.bf16.mxu0 %v755
    %950 = vmatpush2.bf16.msra.mxu0 %v754
    %951 = vmatprep.subr.bf16.mxu0 %v751
    %952 = vmatpush2.bf16.msra.mxu0 %v750
    %953 = vmatprep.subr.bf16.mxu0 %v747
    %954 = vmatpush2.bf16.msra.mxu0 %v746
    %955 = vmatprep.subr.bf16.mxu0 %v743
    %956 = vmatpush2.bf16.msra.mxu0 %v742
    %957 = vmatprep.subr.bf16.mxu0 %v739
    %958 = vmatpush2.bf16.msra.mxu0 %v738
    %959 = vmatprep.subr.bf16.mxu0 %v735
    %960 = vmatpush2.bf16.msra.mxu0 %v734
    %961 = vmatprep.subr.bf16.mxu0 %v731
    %962 = vmatpush2.bf16.msra.mxu0 %v730
    %963 = vmatprep.mubr.bf16.mxu0 %v99
    %964 = vmatmul.mubr.bf16.gmra.mxu0 %v98
    %v965 = vpop.f32.mrf.mxu0
    %v966 = vadd.f32 %v925, %v965
    %v967 = vpop.f32.mrf.mxu0
    %v968 = vadd.f32 %v927, %v967
    %v969 = vpop.f32.mrf.mxu0
    %v970 = vpop.f32.mrf.mxu0
    %971 = vdwg.mxu0
    %972 = vmatprep.subr.bf16.mxu0 %v665
    %973 = vmatpush1.bf16.msra.mxu0 %v664
    %974 = vmatprep.subr.bf16.mxu0 %v661
    %975 = vmatpush1.bf16.msra.mxu0 %v660
    %976 = vmatprep.subr.bf16.mxu0 %v657
    %977 = vmatpush1.bf16.msra.mxu0 %v656
    %978 = vmatprep.subr.bf16.mxu0 %v653
    %979 = vmatpush1.bf16.msra.mxu0 %v652
    %980 = vmatprep.subr.bf16.mxu0 %v649
    %981 = vmatpush1.bf16.msra.mxu0 %v648
    %982 = vmatprep.subr.bf16.mxu0 %v645
    %983 = vmatpush1.bf16.msra.mxu0 %v644
    %984 = vmatprep.subr.bf16.mxu0 %v641
    %985 = vmatpush1.bf16.msra.mxu0 %v640
    %986 = vmatprep.subr.bf16.mxu0 %v637
    %987 = vmatpush1.bf16.msra.mxu0 %v636
    %988 = vmatprep.subr.bf16.mxu0 %v697
    %989 = vmatpush2.bf16.msra.mxu0 %v696
    %990 = vmatprep.subr.bf16.mxu0 %v693
    %991 = vmatpush2.bf16.msra.mxu0 %v692
    %992 = vmatprep.subr.bf16.mxu0 %v689
    %993 = vmatpush2.bf16.msra.mxu0 %v688
    %994 = vmatprep.subr.bf16.mxu0 %v685
    %995 = vmatpush2.bf16.msra.mxu0 %v684
    %996 = vmatprep.subr.bf16.mxu0 %v681
    %997 = vmatpush2.bf16.msra.mxu0 %v680
    %998 = vmatprep.subr.bf16.mxu0 %v677
    %999 = vmatpush2.bf16.msra.mxu0 %v676
    %1000 = vmatprep.subr.bf16.mxu0 %v673
    %1001 = vmatpush2.bf16.msra.mxu0 %v672
    %1002 = vmatprep.subr.bf16.mxu0 %v669
    %1003 = vmatpush2.bf16.msra.mxu0 %v668
    %1004 = vmatprep.mubr.bf16.mxu0 %v97
    %1005 = vmatmul.mubr.bf16.gmra.mxu0 %v96
    %v1006 = vpop.f32.mrf.mxu0
    %v1007 = vadd.f32 %v241, %v1006
    %v1008 = vpop.f32.mrf.mxu0
    %v1009 = vadd.f32 %v245, %v1008
    %v1010 = vpop.f32.mrf.mxu0
    %v1011 = vpop.f32.mrf.mxu0
    %1012 = vdwg.mxu0
    %1013 = vmatprep.subr.bf16.mxu0 %v729
    %1014 = vmatpush1.bf16.msra.mxu0 %v728
    %1015 = vmatprep.subr.bf16.mxu0 %v725
    %1016 = vmatpush1.bf16.msra.mxu0 %v724
    %1017 = vmatprep.subr.bf16.mxu0 %v721
    %1018 = vmatpush1.bf16.msra.mxu0 %v720
    %1019 = vmatprep.subr.bf16.mxu0 %v717
    %1020 = vmatpush1.bf16.msra.mxu0 %v716
    %1021 = vmatprep.subr.bf16.mxu0 %v713
    %1022 = vmatpush1.bf16.msra.mxu0 %v712
    %1023 = vmatprep.subr.bf16.mxu0 %v709
    %1024 = vmatpush1.bf16.msra.mxu0 %v708
    %1025 = vmatprep.subr.bf16.mxu0 %v705
    %1026 = vmatpush1.bf16.msra.mxu0 %v704
    %1027 = vmatprep.subr.bf16.mxu0 %v701
    %1028 = vmatpush1.bf16.msra.mxu0 %v700
    %1029 = vmatprep.subr.bf16.mxu0 %v761
    %1030 = vmatpush2.bf16.msra.mxu0 %v760
    %1031 = vmatprep.subr.bf16.mxu0 %v757
    %1032 = vmatpush2.bf16.msra.mxu0 %v756
    %1033 = vmatprep.subr.bf16.mxu0 %v753
    %1034 = vmatpush2.bf16.msra.mxu0 %v752
    %1035 = vmatprep.subr.bf16.mxu0 %v749
    %1036 = vmatpush2.bf16.msra.mxu0 %v748
    %1037 = vmatprep.subr.bf16.mxu0 %v745
    %1038 = vmatpush2.bf16.msra.mxu0 %v744
    %1039 = vmatprep.subr.bf16.mxu0 %v741
    %1040 = vmatpush2.bf16.msra.mxu0 %v740
    %1041 = vmatprep.subr.bf16.mxu0 %v737
    %1042 = vmatpush2.bf16.msra.mxu0 %v736
    %1043 = vmatprep.subr.bf16.mxu0 %v733
    %1044 = vmatpush2.bf16.msra.mxu0 %v732
    %1045 = vmatprep.mubr.bf16.mxu0 %v99
    %1046 = vmatmul.mubr.bf16.gmra.mxu0 %v98
    %v1047 = vpop.f32.mrf.mxu0
    %v1048 = vadd.f32 %v1007, %v1047
    %v1049 = vpop.f32.mrf.mxu0
    %v1050 = vadd.f32 %v1009, %v1049
    %v1051 = vpop.f32.mrf.mxu0
    %v1052 = vpop.f32.mrf.mxu0
    %1053 = vdwg.mxu0
    %v1054 = vmax.f32 %v966, 0.0
    %v1055 = vmax.f32 %v968, 0.0
    %v1056 = vmax.f32 %v1048, 0.0
    %v1057 = vmax.f32 %v1050, 0.0
    %v1058 = vld [vmem:[#allocation5] sm:$0xff]
    %v1059 = vld [vmem:[#allocation5 + $0x8] sm:$0xff]
    %v1060 = vld [vmem:[#allocation5 + $0x10] sm:$0xff]
    %v1061 = vld [vmem:[#allocation5 + $0x18] sm:$0xff]
    %v1062 = vld [vmem:[#allocation5 + $0x20] sm:$0xff]
    %v1063 = vld [vmem:[#allocation5 + $0x28] sm:$0xff]
    %v1064 = vld [vmem:[#allocation5 + $0x30] sm:$0xff]
    %v1065 = vld [vmem:[#allocation5 + $0x38] sm:$0xff]
    %v1066 = vld [vmem:[#allocation5 + $0x40] sm:$0xff]
    %v1067 = vld [vmem:[#allocation5 + $0x48] sm:$0xff]
    %v1068 = vld [vmem:[#allocation5 + $0x50] sm:$0xff]
    %v1069 = vld [vmem:[#allocation5 + $0x58] sm:$0xff]
    %v1070 = vld [vmem:[#allocation5 + $0x60] sm:$0xff]
    %v1071 = vld [vmem:[#allocation5 + $0x68] sm:$0xff]
    %v1072 = vld [vmem:[#allocation5 + $0x70] sm:$0xff]
    %v1073 = vld [vmem:[#allocation5 + $0x78] sm:$0xff]
    %v1090 = vunpack.c.l.b16 %v1058
    %v1091 = vunpack.c.h.b16 %v1058
    %v1092 = vunpack.c.l.b16 %v1059
    %v1093 = vunpack.c.h.b16 %v1059
    %v1094 = vunpack.c.l.b16 %v1060
    %v1095 = vunpack.c.h.b16 %v1060
    %v1096 = vunpack.c.l.b16 %v1061
    %v1097 = vunpack.c.h.b16 %v1061
    %v1098 = vunpack.c.l.b16 %v1062
    %v1099 = vunpack.c.h.b16 %v1062
    %v1100 = vunpack.c.l.b16 %v1063
    %v1101 = vunpack.c.h.b16 %v1063
    %v1102 = vunpack.c.l.b16 %v1064
    %v1103 = vunpack.c.h.b16 %v1064
    %v1104 = vunpack.c.l.b16 %v1065
    %v1105 = vunpack.c.h.b16 %v1065
    %v1106 = vunpack.c.l.b16 %v1066
    %v1107 = vunpack.c.h.b16 %v1066
    %v1108 = vunpack.c.l.b16 %v1067
    %v1109 = vunpack.c.h.b16 %v1067
    %v1110 = vunpack.c.l.b16 %v1068
    %v1111 = vunpack.c.h.b16 %v1068
    %v1112 = vunpack.c.l.b16 %v1069
    %v1113 = vunpack.c.h.b16 %v1069
    %v1114 = vunpack.c.l.b16 %v1070
    %v1115 = vunpack.c.h.b16 %v1070
    %v1116 = vunpack.c.l.b16 %v1071
    %v1117 = vunpack.c.h.b16 %v1071
    %v1118 = vunpack.c.l.b16 %v1072
    %v1119 = vunpack.c.h.b16 %v1072
    %v1120 = vunpack.c.l.b16 %v1073
    %v1121 = vunpack.c.h.b16 %v1073
    %v1122 = vpack.c.b16 %v1094, %v1090
    %v1123 = vpack.c.b16 %v1095, %v1091
    %v1124 = vpack.c.b16 %v1096, %v1092
    %v1125 = vpack.c.b16 %v1097, %v1093
    %v1126 = vpack.c.b16 %v1102, %v1098
    %v1127 = vpack.c.b16 %v1103, %v1099
    %v1128 = vpack.c.b16 %v1104, %v1100
    %v1129 = vpack.c.b16 %v1105, %v1101
    %v1130 = vpack.c.b16 %v1110, %v1106
    %v1131 = vpack.c.b16 %v1111, %v1107
    %v1132 = vpack.c.b16 %v1112, %v1108
    %v1133 = vpack.c.b16 %v1113, %v1109
    %v1134 = vpack.c.b16 %v1118, %v1114
    %v1135 = vpack.c.b16 %v1119, %v1115
    %v1136 = vpack.c.b16 %v1120, %v1116
    %v1137 = vpack.c.b16 %v1121, %v1117
    %vm1154 = vcmask 523264
    %v1156 = vsel %vm1154, %v95, 0
    %1158 = vmatprep.subr.bf16.mxu0 0
    %1159 = vmatpush1.bf16.msra.mxu0 0
    %1160 = vmatprep.subr.bf16.mxu0 0
    %1161 = vmatpush1.bf16.msra.mxu0 0
    %1162 = vmatprep.subr.bf16.mxu0 0
    %1163 = vmatpush1.bf16.msra.mxu0 0
    %1164 = vmatprep.subr.bf16.mxu0 0
    %1165 = vmatpush1.bf16.msra.mxu0 0
    %1166 = vmatprep.subr.bf16.mxu0 %v1135
    %1167 = vmatpush1.bf16.msra.mxu0 %v1134
    %1168 = vmatprep.subr.bf16.mxu0 %v1131
    %1169 = vmatpush1.bf16.msra.mxu0 %v1130
    %1170 = vmatprep.subr.bf16.mxu0 %v1127
    %1171 = vmatpush1.bf16.msra.mxu0 %v1126
    %1172 = vmatprep.subr.bf16.mxu0 %v1123
    %1173 = vmatpush1.bf16.msra.mxu0 %v1122
    %1174 = vmatprep.subr.bf16.mxu0 0
    %1175 = vmatpush2.bf16.msra.mxu0 0
    %1176 = vmatprep.subr.bf16.mxu0 0
    %1177 = vmatpush2.bf16.msra.mxu0 0
    %1178 = vmatprep.subr.bf16.mxu0 0
    %1179 = vmatpush2.bf16.msra.mxu0 0
    %1180 = vmatprep.subr.bf16.mxu0 0
    %1181 = vmatpush2.bf16.msra.mxu0 0
    %1182 = vmatprep.subr.bf16.mxu0 0
    %1183 = vmatpush2.bf16.msra.mxu0 0
    %1184 = vmatprep.subr.bf16.mxu0 0
    %1185 = vmatpush2.bf16.msra.mxu0 0
    %1186 = vmatprep.subr.bf16.mxu0 0
    %1187 = vmatpush2.bf16.msra.mxu0 0
    %1188 = vmatprep.subr.bf16.mxu0 0
    %1189 = vmatpush2.bf16.msra.mxu0 0
    %1190 = vmatprep.mubr.bf16.mxu0 0
    %1191 = vmatmul.mubr.bf16.gmra.mxu0 %v1156
    %v1192 = vpop.f32.mrf.mxu0
    %v1193 = vadd.f32 0.0, %v1192
    %v1194 = vpop.f32.mrf.mxu0
    %v1195 = vadd.f32 0.0, %v1194
    %v1196 = vpop.f32.mrf.mxu0
    %v1197 = vpop.f32.mrf.mxu0
    %1198 = vdwg.mxu0
    %1199 = vmatprep.subr.bf16.mxu0 0
    %1200 = vmatpush1.bf16.msra.mxu0 0
    %1201 = vmatprep.subr.bf16.mxu0 0
    %1202 = vmatpush1.bf16.msra.mxu0 0
    %1203 = vmatprep.subr.bf16.mxu0 0
    %1204 = vmatpush1.bf16.msra.mxu0 0
    %1205 = vmatprep.subr.bf16.mxu0 0
    %1206 = vmatpush1.bf16.msra.mxu0 0
    %1207 = vmatprep.subr.bf16.mxu0 %v1137
    %1208 = vmatpush1.bf16.msra.mxu0 %v1136
    %1209 = vmatprep.subr.bf16.mxu0 %v1133
    %1210 = vmatpush1.bf16.msra.mxu0 %v1132
    %1211 = vmatprep.subr.bf16.mxu0 %v1129
    %1212 = vmatpush1.bf16.msra.mxu0 %v1128
    %1213 = vmatprep.subr.bf16.mxu0 %v1125
    %1214 = vmatpush1.bf16.msra.mxu0 %v1124
    %1215 = vmatprep.subr.bf16.mxu0 0
    %1216 = vmatpush2.bf16.msra.mxu0 0
    %1217 = vmatprep.subr.bf16.mxu0 0
    %1218 = vmatpush2.bf16.msra.mxu0 0
    %1219 = vmatprep.subr.bf16.mxu0 0
    %1220 = vmatpush2.bf16.msra.mxu0 0
    %1221 = vmatprep.subr.bf16.mxu0 0
    %1222 = vmatpush2.bf16.msra.mxu0 0
    %1223 = vmatprep.subr.bf16.mxu0 0
    %1224 = vmatpush2.bf16.msra.mxu0 0
    %1225 = vmatprep.subr.bf16.mxu0 0
    %1226 = vmatpush2.bf16.msra.mxu0 0
    %1227 = vmatprep.subr.bf16.mxu0 0
    %1228 = vmatpush2.bf16.msra.mxu0 0
    %1229 = vmatprep.subr.bf16.mxu0 0
    %1230 = vmatpush2.bf16.msra.mxu0 0
    %1231 = vmatprep.mubr.bf16.mxu0 0
    %1232 = vmatmul.mubr.bf16.gmra.mxu0 %v1156
    %v1233 = vpop.f32.mrf.mxu0
    %v1234 = vadd.f32 0.0, %v1233
    %v1235 = vpop.f32.mrf.mxu0
    %v1236 = vadd.f32 0.0, %v1235
    %v1237 = vpop.f32.mrf.mxu0
    %v1238 = vpop.f32.mrf.mxu0
    %1239 = vdwg.mxu0
    %v1240 = vadd.f32 %v1054, %v1193
    %v1241 = vadd.f32 %v1055, %v1195
    %v1242 = vadd.f32 %v1056, %v1234
    %v1243 = vadd.f32 %v1057, %v1236
    %v1244 = vld [vmem:[%s5] sm:$0xf]
    %v1246 = vlaneseq
    %v1247 = vshrl.u32 %v1246, 7
    %v1248 = vsub.s32 0, %v1247
    %v1249 = vrot.slane %v1244, %v1248
    %v1250 = vlaneseq
    %v1251 = vshrl.u32 %v1250, 7
    %v1252 = vsub.s32 1, %v1251
    %v1253 = vrot.slane %v1244, %v1252
    %v1254 = vlaneseq
    %v1255 = vshrl.u32 %v1254, 7
    %v1256 = vsub.s32 2, %v1255
    %v1257 = vrot.slane %v1244, %v1256
    %v1258 = vlaneseq
    %v1259 = vshrl.u32 %v1258, 7
    %v1260 = vsub.s32 3, %v1259
    %v1261 = vrot.slane %v1244, %v1260
    %v1266 = vadd.f32 %v1240, %v1249
    %v1267 = vadd.f32 %v1241, %v1253
    %v1268 = vadd.f32 %v1242, %v1257
    %v1269 = vadd.f32 %v1243, %v1261
    %v1270 = vpack.c.bf16 %v1266, %v1266
    %v1271 = vpack.c.bf16 %v1267, %v1267
    %v1272 = vpack.c.bf16 %v1268, %v1268
    %v1273 = vpack.c.bf16 %v1269, %v1269
    %v1274 = vld [vmem:[#allocation7] sm:$0xff]
    %v1275 = vld [vmem:[#allocation7 + $0x8] sm:$0xff]
    %v1276 = vld [vmem:[#allocation7 + $0x10] sm:$0xff]
    %v1277 = vld [vmem:[#allocation7 + $0x18] sm:$0xff]
    %v1278 = vld [vmem:[#allocation7 + $0x20] sm:$0xff]
    %v1279 = vld [vmem:[#allocation7 + $0x28] sm:$0xff]
    %v1280 = vld [vmem:[#allocation7 + $0x30] sm:$0xff]
    %v1281 = vld [vmem:[#allocation7 + $0x38] sm:$0xff]
    %v1282 = vld [vmem:[#allocation7 + $0x40] sm:$0xff]
    %v1283 = vld [vmem:[#allocation7 + $0x48] sm:$0xff]
    %v1284 = vld [vmem:[#allocation7 + $0x50] sm:$0xff]
    %v1285 = vld [vmem:[#allocation7 + $0x58] sm:$0xff]
    %v1286 = vld [vmem:[#allocation7 + $0x60] sm:$0xff]
    %v1287 = vld [vmem:[#allocation7 + $0x68] sm:$0xff]
    %v1288 = vld [vmem:[#allocation7 + $0x70] sm:$0xff]
    %v1289 = vld [vmem:[#allocation7 + $0x78] sm:$0xff]
    %v1290 = vld [vmem:[#allocation7 + $0x80] sm:$0xff]
    %v1291 = vld [vmem:[#allocation7 + $0x88] sm:$0xff]
    %v1292 = vld [vmem:[#allocation7 + $0x90] sm:$0xff]
    %v1293 = vld [vmem:[#allocation7 + $0x98] sm:$0xff]
    %v1294 = vld [vmem:[#allocation7 + $0xa0] sm:$0xff]
    %v1295 = vld [vmem:[#allocation7 + $0xa8] sm:$0xff]
    %v1296 = vld [vmem:[#allocation7 + $0xb0] sm:$0xff]
    %v1297 = vld [vmem:[#allocation7 + $0xb8] sm:$0xff]
    %v1298 = vld [vmem:[#allocation7 + $0xc0] sm:$0xff]
    %v1299 = vld [vmem:[#allocation7 + $0xc8] sm:$0xff]
    %v1300 = vld [vmem:[#allocation7 + $0xd0] sm:$0xff]
    %v1301 = vld [vmem:[#allocation7 + $0xd8] sm:$0xff]
    %v1302 = vld [vmem:[#allocation7 + $0xe0] sm:$0xff]
    %v1303 = vld [vmem:[#allocation7 + $0xe8] sm:$0xff]
    %v1304 = vld [vmem:[#allocation7 + $0xf0] sm:$0xff]
    %v1305 = vld [vmem:[#allocation7 + $0xf8] sm:$0xff]
    %v1306 = vld [vmem:[#allocation7 + $0x100] sm:$0xff]
    %v1307 = vld [vmem:[#allocation7 + $0x108] sm:$0xff]
    %v1308 = vld [vmem:[#allocation7 + $0x110] sm:$0xff]
    %v1309 = vld [vmem:[#allocation7 + $0x118] sm:$0xff]
    %v1310 = vld [vmem:[#allocation7 + $0x120] sm:$0xff]
    %v1311 = vld [vmem:[#allocation7 + $0x128] sm:$0xff]
    %v1312 = vld [vmem:[#allocation7 + $0x130] sm:$0xff]
    %v1313 = vld [vmem:[#allocation7 + $0x138] sm:$0xff]
    %v1314 = vld [vmem:[#allocation7 + $0x140] sm:$0xff]
    %v1315 = vld [vmem:[#allocation7 + $0x148] sm:$0xff]
    %v1316 = vld [vmem:[#allocation7 + $0x150] sm:$0xff]
    %v1317 = vld [vmem:[#allocation7 + $0x158] sm:$0xff]
    %v1318 = vld [vmem:[#allocation7 + $0x160] sm:$0xff]
    %v1319 = vld [vmem:[#allocation7 + $0x168] sm:$0xff]
    %v1320 = vld [vmem:[#allocation7 + $0x170] sm:$0xff]
    %v1321 = vld [vmem:[#allocation7 + $0x178] sm:$0xff]
    %v1322 = vld [vmem:[#allocation7 + $0x180] sm:$0xff]
    %v1323 = vld [vmem:[#allocation7 + $0x188] sm:$0xff]
    %v1324 = vld [vmem:[#allocation7 + $0x190] sm:$0xff]
    %v1325 = vld [vmem:[#allocation7 + $0x198] sm:$0xff]
    %v1326 = vld [vmem:[#allocation7 + $0x1a0] sm:$0xff]
    %v1327 = vld [vmem:[#allocation7 + $0x1a8] sm:$0xff]
    %v1328 = vld [vmem:[#allocation7 + $0x1b0] sm:$0xff]
    %v1329 = vld [vmem:[#allocation7 + $0x1b8] sm:$0xff]
    %v1330 = vld [vmem:[#allocation7 + $0x1c0] sm:$0xff]
    %v1331 = vld [vmem:[#allocation7 + $0x1c8] sm:$0xff]
    %v1332 = vld [vmem:[#allocation7 + $0x1d0] sm:$0xff]
    %v1333 = vld [vmem:[#allocation7 + $0x1d8] sm:$0xff]
    %v1334 = vld [vmem:[#allocation7 + $0x1e0] sm:$0xff]
    %v1335 = vld [vmem:[#allocation7 + $0x1e8] sm:$0xff]
    %v1336 = vld [vmem:[#allocation7 + $0x1f0] sm:$0xff]
    %v1337 = vld [vmem:[#allocation7 + $0x1f8] sm:$0xff]
    %v1338 = vld [vmem:[#allocation7 + $0x200] sm:$0xff]
    %v1339 = vld [vmem:[#allocation7 + $0x208] sm:$0xff]
    %v1340 = vld [vmem:[#allocation7 + $0x210] sm:$0xff]
    %v1341 = vld [vmem:[#allocation7 + $0x218] sm:$0xff]
    %v1342 = vld [vmem:[#allocation7 + $0x220] sm:$0xff]
    %v1343 = vld [vmem:[#allocation7 + $0x228] sm:$0xff]
    %v1344 = vld [vmem:[#allocation7 + $0x230] sm:$0xff]
    %v1345 = vld [vmem:[#allocation7 + $0x238] sm:$0xff]
    %v1346 = vld [vmem:[#allocation7 + $0x240] sm:$0xff]
    %v1347 = vld [vmem:[#allocation7 + $0x248] sm:$0xff]
    %v1348 = vld [vmem:[#allocation7 + $0x250] sm:$0xff]
    %v1349 = vld [vmem:[#allocation7 + $0x258] sm:$0xff]
    %v1350 = vld [vmem:[#allocation7 + $0x260] sm:$0xff]
    %v1351 = vld [vmem:[#allocation7 + $0x268] sm:$0xff]
    %v1352 = vld [vmem:[#allocation7 + $0x270] sm:$0xff]
    %v1353 = vld [vmem:[#allocation7 + $0x278] sm:$0xff]
    %v1354 = vld [vmem:[#allocation7 + $0x280] sm:$0xff]
    %v1355 = vld [vmem:[#allocation7 + $0x288] sm:$0xff]
    %v1356 = vld [vmem:[#allocation7 + $0x290] sm:$0xff]
    %v1357 = vld [vmem:[#allocation7 + $0x298] sm:$0xff]
    %v1358 = vld [vmem:[#allocation7 + $0x2a0] sm:$0xff]
    %v1359 = vld [vmem:[#allocation7 + $0x2a8] sm:$0xff]
    %v1360 = vld [vmem:[#allocation7 + $0x2b0] sm:$0xff]
    %v1361 = vld [vmem:[#allocation7 + $0x2b8] sm:$0xff]
    %v1362 = vld [vmem:[#allocation7 + $0x2c0] sm:$0xff]
    %v1363 = vld [vmem:[#allocation7 + $0x2c8] sm:$0xff]
    %v1364 = vld [vmem:[#allocation7 + $0x2d0] sm:$0xff]
    %v1365 = vld [vmem:[#allocation7 + $0x2d8] sm:$0xff]
    %v1366 = vld [vmem:[#allocation7 + $0x2e0] sm:$0xff]
    %v1367 = vld [vmem:[#allocation7 + $0x2e8] sm:$0xff]
    %v1368 = vld [vmem:[#allocation7 + $0x2f0] sm:$0xff]
    %v1369 = vld [vmem:[#allocation7 + $0x2f8] sm:$0xff]
    %v1370 = vld [vmem:[#allocation7 + $0x300] sm:$0xff]
    %v1371 = vld [vmem:[#allocation7 + $0x308] sm:$0xff]
    %v1372 = vld [vmem:[#allocation7 + $0x310] sm:$0xff]
    %v1373 = vld [vmem:[#allocation7 + $0x318] sm:$0xff]
    %v1374 = vld [vmem:[#allocation7 + $0x320] sm:$0xff]
    %v1375 = vld [vmem:[#allocation7 + $0x328] sm:$0xff]
    %v1376 = vld [vmem:[#allocation7 + $0x330] sm:$0xff]
    %v1377 = vld [vmem:[#allocation7 + $0x338] sm:$0xff]
    %v1378 = vld [vmem:[#allocation7 + $0x340] sm:$0xff]
    %v1379 = vld [vmem:[#allocation7 + $0x348] sm:$0xff]
    %v1380 = vld [vmem:[#allocation7 + $0x350] sm:$0xff]
    %v1381 = vld [vmem:[#allocation7 + $0x358] sm:$0xff]
    %v1382 = vld [vmem:[#allocation7 + $0x360] sm:$0xff]
    %v1383 = vld [vmem:[#allocation7 + $0x368] sm:$0xff]
    %v1384 = vld [vmem:[#allocation7 + $0x370] sm:$0xff]
    %v1385 = vld [vmem:[#allocation7 + $0x378] sm:$0xff]
    %v1386 = vld [vmem:[#allocation7 + $0x380] sm:$0xff]
    %v1387 = vld [vmem:[#allocation7 + $0x388] sm:$0xff]
    %v1388 = vld [vmem:[#allocation7 + $0x390] sm:$0xff]
    %v1389 = vld [vmem:[#allocation7 + $0x398] sm:$0xff]
    %v1390 = vld [vmem:[#allocation7 + $0x3a0] sm:$0xff]
    %v1391 = vld [vmem:[#allocation7 + $0x3a8] sm:$0xff]
    %v1392 = vld [vmem:[#allocation7 + $0x3b0] sm:$0xff]
    %v1393 = vld [vmem:[#allocation7 + $0x3b8] sm:$0xff]
    %v1394 = vld [vmem:[#allocation7 + $0x3c0] sm:$0xff]
    %v1395 = vld [vmem:[#allocation7 + $0x3c8] sm:$0xff]
    %v1396 = vld [vmem:[#allocation7 + $0x3d0] sm:$0xff]
    %v1397 = vld [vmem:[#allocation7 + $0x3d8] sm:$0xff]
    %v1398 = vld [vmem:[#allocation7 + $0x3e0] sm:$0xff]
    %v1399 = vld [vmem:[#allocation7 + $0x3e8] sm:$0xff]
    %v1400 = vld [vmem:[#allocation7 + $0x3f0] sm:$0xff]
    %v1401 = vld [vmem:[#allocation7 + $0x3f8] sm:$0xff]
    %v1402 = vld [vmem:[%s7] sm:$0xf]
    %v1404 = vlaneseq
    %v1405 = vshrl.u32 %v1404, 7
    %v1406 = vsub.s32 0, %v1405
    %v1407 = vrot.slane %v1402, %v1406
    %v1408 = vlaneseq
    %v1409 = vshrl.u32 %v1408, 7
    %v1410 = vsub.s32 1, %v1409
    %v1411 = vrot.slane %v1402, %v1410
    %v1412 = vlaneseq
    %v1413 = vshrl.u32 %v1412, 7
    %v1414 = vsub.s32 2, %v1413
    %v1415 = vrot.slane %v1402, %v1414
    %v1416 = vlaneseq
    %v1417 = vshrl.u32 %v1416, 7
    %v1418 = vsub.s32 3, %v1417
    %v1419 = vrot.slane %v1402, %v1418
    %v1552 = vunpack.c.l.b16 %v1274
    %v1553 = vunpack.c.h.b16 %v1274
    %v1554 = vunpack.c.l.b16 %v1275
    %v1555 = vunpack.c.h.b16 %v1275
    %v1556 = vunpack.c.l.b16 %v1276
    %v1557 = vunpack.c.h.b16 %v1276
    %v1558 = vunpack.c.l.b16 %v1277
    %v1559 = vunpack.c.h.b16 %v1277
    %v1560 = vunpack.c.l.b16 %v1278
    %v1561 = vunpack.c.h.b16 %v1278
    %v1562 = vunpack.c.l.b16 %v1279
    %v1563 = vunpack.c.h.b16 %v1279
    %v1564 = vunpack.c.l.b16 %v1280
    %v1565 = vunpack.c.h.b16 %v1280
    %v1566 = vunpack.c.l.b16 %v1281
    %v1567 = vunpack.c.h.b16 %v1281
    %v1568 = vunpack.c.l.b16 %v1282
    %v1569 = vunpack.c.h.b16 %v1282
    %v1570 = vunpack.c.l.b16 %v1283
    %v1571 = vunpack.c.h.b16 %v1283
    %v1572 = vunpack.c.l.b16 %v1284
    %v1573 = vunpack.c.h.b16 %v1284
    %v1574 = vunpack.c.l.b16 %v1285
    %v1575 = vunpack.c.h.b16 %v1285
    %v1576 = vunpack.c.l.b16 %v1286
    %v1577 = vunpack.c.h.b16 %v1286
    %v1578 = vunpack.c.l.b16 %v1287
    %v1579 = vunpack.c.h.b16 %v1287
    %v1580 = vunpack.c.l.b16 %v1288
    %v1581 = vunpack.c.h.b16 %v1288
    %v1582 = vunpack.c.l.b16 %v1289
    %v1583 = vunpack.c.h.b16 %v1289
    %v1584 = vunpack.c.l.b16 %v1290
    %v1585 = vunpack.c.h.b16 %v1290
    %v1586 = vunpack.c.l.b16 %v1291
    %v1587 = vunpack.c.h.b16 %v1291
    %v1588 = vunpack.c.l.b16 %v1292
    %v1589 = vunpack.c.h.b16 %v1292
    %v1590 = vunpack.c.l.b16 %v1293
    %v1591 = vunpack.c.h.b16 %v1293
    %v1592 = vunpack.c.l.b16 %v1294
    %v1593 = vunpack.c.h.b16 %v1294
    %v1594 = vunpack.c.l.b16 %v1295
    %v1595 = vunpack.c.h.b16 %v1295
    %v1596 = vunpack.c.l.b16 %v1296
    %v1597 = vunpack.c.h.b16 %v1296
    %v1598 = vunpack.c.l.b16 %v1297
    %v1599 = vunpack.c.h.b16 %v1297
    %v1600 = vunpack.c.l.b16 %v1298
    %v1601 = vunpack.c.h.b16 %v1298
    %v1602 = vunpack.c.l.b16 %v1299
    %v1603 = vunpack.c.h.b16 %v1299
    %v1604 = vunpack.c.l.b16 %v1300
    %v1605 = vunpack.c.h.b16 %v1300
    %v1606 = vunpack.c.l.b16 %v1301
    %v1607 = vunpack.c.h.b16 %v1301
    %v1608 = vunpack.c.l.b16 %v1302
    %v1609 = vunpack.c.h.b16 %v1302
    %v1610 = vunpack.c.l.b16 %v1303
    %v1611 = vunpack.c.h.b16 %v1303
    %v1612 = vunpack.c.l.b16 %v1304
    %v1613 = vunpack.c.h.b16 %v1304
    %v1614 = vunpack.c.l.b16 %v1305
    %v1615 = vunpack.c.h.b16 %v1305
    %v1616 = vunpack.c.l.b16 %v1306
    %v1617 = vunpack.c.h.b16 %v1306
    %v1618 = vunpack.c.l.b16 %v1307
    %v1619 = vunpack.c.h.b16 %v1307
    %v1620 = vunpack.c.l.b16 %v1308
    %v1621 = vunpack.c.h.b16 %v1308
    %v1622 = vunpack.c.l.b16 %v1309
    %v1623 = vunpack.c.h.b16 %v1309
    %v1624 = vunpack.c.l.b16 %v1310
    %v1625 = vunpack.c.h.b16 %v1310
    %v1626 = vunpack.c.l.b16 %v1311
    %v1627 = vunpack.c.h.b16 %v1311
    %v1628 = vunpack.c.l.b16 %v1312
    %v1629 = vunpack.c.h.b16 %v1312
    %v1630 = vunpack.c.l.b16 %v1313
    %v1631 = vunpack.c.h.b16 %v1313
    %v1632 = vunpack.c.l.b16 %v1314
    %v1633 = vunpack.c.h.b16 %v1314
    %v1634 = vunpack.c.l.b16 %v1315
    %v1635 = vunpack.c.h.b16 %v1315
    %v1636 = vunpack.c.l.b16 %v1316
    %v1637 = vunpack.c.h.b16 %v1316
    %v1638 = vunpack.c.l.b16 %v1317
    %v1639 = vunpack.c.h.b16 %v1317
    %v1640 = vunpack.c.l.b16 %v1318
    %v1641 = vunpack.c.h.b16 %v1318
    %v1642 = vunpack.c.l.b16 %v1319
    %v1643 = vunpack.c.h.b16 %v1319
    %v1644 = vunpack.c.l.b16 %v1320
    %v1645 = vunpack.c.h.b16 %v1320
    %v1646 = vunpack.c.l.b16 %v1321
    %v1647 = vunpack.c.h.b16 %v1321
    %v1648 = vunpack.c.l.b16 %v1322
    %v1649 = vunpack.c.h.b16 %v1322
    %v1650 = vunpack.c.l.b16 %v1323
    %v1651 = vunpack.c.h.b16 %v1323
    %v1652 = vunpack.c.l.b16 %v1324
    %v1653 = vunpack.c.h.b16 %v1324
    %v1654 = vunpack.c.l.b16 %v1325
    %v1655 = vunpack.c.h.b16 %v1325
    %v1656 = vunpack.c.l.b16 %v1326
    %v1657 = vunpack.c.h.b16 %v1326
    %v1658 = vunpack.c.l.b16 %v1327
    %v1659 = vunpack.c.h.b16 %v1327
    %v1660 = vunpack.c.l.b16 %v1328
    %v1661 = vunpack.c.h.b16 %v1328
    %v1662 = vunpack.c.l.b16 %v1329
    %v1663 = vunpack.c.h.b16 %v1329
    %v1664 = vunpack.c.l.b16 %v1330
    %v1665 = vunpack.c.h.b16 %v1330
    %v1666 = vunpack.c.l.b16 %v1331
    %v1667 = vunpack.c.h.b16 %v1331
    %v1668 = vunpack.c.l.b16 %v1332
    %v1669 = vunpack.c.h.b16 %v1332
    %v1670 = vunpack.c.l.b16 %v1333
    %v1671 = vunpack.c.h.b16 %v1333
    %v1672 = vunpack.c.l.b16 %v1334
    %v1673 = vunpack.c.h.b16 %v1334
    %v1674 = vunpack.c.l.b16 %v1335
    %v1675 = vunpack.c.h.b16 %v1335
    %v1676 = vunpack.c.l.b16 %v1336
    %v1677 = vunpack.c.h.b16 %v1336
    %v1678 = vunpack.c.l.b16 %v1337
    %v1679 = vunpack.c.h.b16 %v1337
    %v1680 = vunpack.c.l.b16 %v1338
    %v1681 = vunpack.c.h.b16 %v1338
    %v1682 = vunpack.c.l.b16 %v1339
    %v1683 = vunpack.c.h.b16 %v1339
    %v1684 = vunpack.c.l.b16 %v1340
    %v1685 = vunpack.c.h.b16 %v1340
    %v1686 = vunpack.c.l.b16 %v1341
    %v1687 = vunpack.c.h.b16 %v1341
    %v1688 = vunpack.c.l.b16 %v1342
    %v1689 = vunpack.c.h.b16 %v1342
    %v1690 = vunpack.c.l.b16 %v1343
    %v1691 = vunpack.c.h.b16 %v1343
    %v1692 = vunpack.c.l.b16 %v1344
    %v1693 = vunpack.c.h.b16 %v1344
    %v1694 = vunpack.c.l.b16 %v1345
    %v1695 = vunpack.c.h.b16 %v1345
    %v1696 = vunpack.c.l.b16 %v1346
    %v1697 = vunpack.c.h.b16 %v1346
    %v1698 = vunpack.c.l.b16 %v1347
    %v1699 = vunpack.c.h.b16 %v1347
    %v1700 = vunpack.c.l.b16 %v1348
    %v1701 = vunpack.c.h.b16 %v1348
    %v1702 = vunpack.c.l.b16 %v1349
    %v1703 = vunpack.c.h.b16 %v1349
    %v1704 = vunpack.c.l.b16 %v1350
    %v1705 = vunpack.c.h.b16 %v1350
    %v1706 = vunpack.c.l.b16 %v1351
    %v1707 = vunpack.c.h.b16 %v1351
    %v1708 = vunpack.c.l.b16 %v1352
    %v1709 = vunpack.c.h.b16 %v1352
    %v1710 = vunpack.c.l.b16 %v1353
    %v1711 = vunpack.c.h.b16 %v1353
    %v1712 = vunpack.c.l.b16 %v1354
    %v1713 = vunpack.c.h.b16 %v1354
    %v1714 = vunpack.c.l.b16 %v1355
    %v1715 = vunpack.c.h.b16 %v1355
    %v1716 = vunpack.c.l.b16 %v1356
    %v1717 = vunpack.c.h.b16 %v1356
    %v1718 = vunpack.c.l.b16 %v1357
    %v1719 = vunpack.c.h.b16 %v1357
    %v1720 = vunpack.c.l.b16 %v1358
    %v1721 = vunpack.c.h.b16 %v1358
    %v1722 = vunpack.c.l.b16 %v1359
    %v1723 = vunpack.c.h.b16 %v1359
    %v1724 = vunpack.c.l.b16 %v1360
    %v1725 = vunpack.c.h.b16 %v1360
    %v1726 = vunpack.c.l.b16 %v1361
    %v1727 = vunpack.c.h.b16 %v1361
    %v1728 = vunpack.c.l.b16 %v1362
    %v1729 = vunpack.c.h.b16 %v1362
    %v1730 = vunpack.c.l.b16 %v1363
    %v1731 = vunpack.c.h.b16 %v1363
    %v1732 = vunpack.c.l.b16 %v1364
    %v1733 = vunpack.c.h.b16 %v1364
    %v1734 = vunpack.c.l.b16 %v1365
    %v1735 = vunpack.c.h.b16 %v1365
    %v1736 = vunpack.c.l.b16 %v1366
    %v1737 = vunpack.c.h.b16 %v1366
    %v1738 = vunpack.c.l.b16 %v1367
    %v1739 = vunpack.c.h.b16 %v1367
    %v1740 = vunpack.c.l.b16 %v1368
    %v1741 = vunpack.c.h.b16 %v1368
    %v1742 = vunpack.c.l.b16 %v1369
    %v1743 = vunpack.c.h.b16 %v1369
    %v1744 = vunpack.c.l.b16 %v1370
    %v1745 = vunpack.c.h.b16 %v1370
    %v1746 = vunpack.c.l.b16 %v1371
    %v1747 = vunpack.c.h.b16 %v1371
    %v1748 = vunpack.c.l.b16 %v1372
    %v1749 = vunpack.c.h.b16 %v1372
    %v1750 = vunpack.c.l.b16 %v1373
    %v1751 = vunpack.c.h.b16 %v1373
    %v1752 = vunpack.c.l.b16 %v1374
    %v1753 = vunpack.c.h.b16 %v1374
    %v1754 = vunpack.c.l.b16 %v1375
    %v1755 = vunpack.c.h.b16 %v1375
    %v1756 = vunpack.c.l.b16 %v1376
    %v1757 = vunpack.c.h.b16 %v1376
    %v1758 = vunpack.c.l.b16 %v1377
    %v1759 = vunpack.c.h.b16 %v1377
    %v1760 = vunpack.c.l.b16 %v1378
    %v1761 = vunpack.c.h.b16 %v1378
    %v1762 = vunpack.c.l.b16 %v1379
    %v1763 = vunpack.c.h.b16 %v1379
    %v1764 = vunpack.c.l.b16 %v1380
    %v1765 = vunpack.c.h.b16 %v1380
    %v1766 = vunpack.c.l.b16 %v1381
    %v1767 = vunpack.c.h.b16 %v1381
    %v1768 = vunpack.c.l.b16 %v1382
    %v1769 = vunpack.c.h.b16 %v1382
    %v1770 = vunpack.c.l.b16 %v1383
    %v1771 = vunpack.c.h.b16 %v1383
    %v1772 = vunpack.c.l.b16 %v1384
    %v1773 = vunpack.c.h.b16 %v1384
    %v1774 = vunpack.c.l.b16 %v1385
    %v1775 = vunpack.c.h.b16 %v1385
    %v1776 = vunpack.c.l.b16 %v1386
    %v1777 = vunpack.c.h.b16 %v1386
    %v1778 = vunpack.c.l.b16 %v1387
    %v1779 = vunpack.c.h.b16 %v1387
    %v1780 = vunpack.c.l.b16 %v1388
    %v1781 = vunpack.c.h.b16 %v1388
    %v1782 = vunpack.c.l.b16 %v1389
    %v1783 = vunpack.c.h.b16 %v1389
    %v1784 = vunpack.c.l.b16 %v1390
    %v1785 = vunpack.c.h.b16 %v1390
    %v1786 = vunpack.c.l.b16 %v1391
    %v1787 = vunpack.c.h.b16 %v1391
    %v1788 = vunpack.c.l.b16 %v1392
    %v1789 = vunpack.c.h.b16 %v1392
    %v1790 = vunpack.c.l.b16 %v1393
    %v1791 = vunpack.c.h.b16 %v1393
    %v1792 = vunpack.c.l.b16 %v1394
    %v1793 = vunpack.c.h.b16 %v1394
    %v1794 = vunpack.c.l.b16 %v1395
    %v1795 = vunpack.c.h.b16 %v1395
    %v1796 = vunpack.c.l.b16 %v1396
    %v1797 = vunpack.c.h.b16 %v1396
    %v1798 = vunpack.c.l.b16 %v1397
    %v1799 = vunpack.c.h.b16 %v1397
    %v1800 = vunpack.c.l.b16 %v1398
    %v1801 = vunpack.c.h.b16 %v1398
    %v1802 = vunpack.c.l.b16 %v1399
    %v1803 = vunpack.c.h.b16 %v1399
    %v1804 = vunpack.c.l.b16 %v1400
    %v1805 = vunpack.c.h.b16 %v1400
    %v1806 = vunpack.c.l.b16 %v1401
    %v1807 = vunpack.c.h.b16 %v1401
    %v1808 = vpack.c.b16 %v1556, %v1552
    %v1809 = vpack.c.b16 %v1557, %v1553
    %v1810 = vpack.c.b16 %v1558, %v1554
    %v1811 = vpack.c.b16 %v1559, %v1555
    %v1812 = vpack.c.b16 %v1564, %v1560
    %v1813 = vpack.c.b16 %v1565, %v1561
    %v1814 = vpack.c.b16 %v1566, %v1562
    %v1815 = vpack.c.b16 %v1567, %v1563
    %v1816 = vpack.c.b16 %v1572, %v1568
    %v1817 = vpack.c.b16 %v1573, %v1569
    %v1818 = vpack.c.b16 %v1574, %v1570
    %v1819 = vpack.c.b16 %v1575, %v1571
    %v1820 = vpack.c.b16 %v1580, %v1576
    %v1821 = vpack.c.b16 %v1581, %v1577
    %v1822 = vpack.c.b16 %v1582, %v1578
    %v1823 = vpack.c.b16 %v1583, %v1579
    %v1824 = vpack.c.b16 %v1588, %v1584
    %v1825 = vpack.c.b16 %v1589, %v1585
    %v1826 = vpack.c.b16 %v1590, %v1586
    %v1827 = vpack.c.b16 %v1591, %v1587
    %v1828 = vpack.c.b16 %v1596, %v1592
    %v1829 = vpack.c.b16 %v1597, %v1593
    %v1830 = vpack.c.b16 %v1598, %v1594
    %v1831 = vpack.c.b16 %v1599, %v1595
    %v1832 = vpack.c.b16 %v1604, %v1600
    %v1833 = vpack.c.b16 %v1605, %v1601
    %v1834 = vpack.c.b16 %v1606, %v1602
    %v1835 = vpack.c.b16 %v1607, %v1603
    %v1836 = vpack.c.b16 %v1612, %v1608
    %v1837 = vpack.c.b16 %v1613, %v1609
    %v1838 = vpack.c.b16 %v1614, %v1610
    %v1839 = vpack.c.b16 %v1615, %v1611
    %v1840 = vpack.c.b16 %v1620, %v1616
    %v1841 = vpack.c.b16 %v1621, %v1617
    %v1842 = vpack.c.b16 %v1622, %v1618
    %v1843 = vpack.c.b16 %v1623, %v1619
    %v1844 = vpack.c.b16 %v1628, %v1624
    %v1845 = vpack.c.b16 %v1629, %v1625
    %v1846 = vpack.c.b16 %v1630, %v1626
    %v1847 = vpack.c.b16 %v1631, %v1627
    %v1848 = vpack.c.b16 %v1636, %v1632
    %v1849 = vpack.c.b16 %v1637, %v1633
    %v1850 = vpack.c.b16 %v1638, %v1634
    %v1851 = vpack.c.b16 %v1639, %v1635
    %v1852 = vpack.c.b16 %v1644, %v1640
    %v1853 = vpack.c.b16 %v1645, %v1641
    %v1854 = vpack.c.b16 %v1646, %v1642
    %v1855 = vpack.c.b16 %v1647, %v1643
    %v1856 = vpack.c.b16 %v1652, %v1648
    %v1857 = vpack.c.b16 %v1653, %v1649
    %v1858 = vpack.c.b16 %v1654, %v1650
    %v1859 = vpack.c.b16 %v1655, %v1651
    %v1860 = vpack.c.b16 %v1660, %v1656
    %v1861 = vpack.c.b16 %v1661, %v1657
    %v1862 = vpack.c.b16 %v1662, %v1658
    %v1863 = vpack.c.b16 %v1663, %v1659
    %v1864 = vpack.c.b16 %v1668, %v1664
    %v1865 = vpack.c.b16 %v1669, %v1665
    %v1866 = vpack.c.b16 %v1670, %v1666
    %v1867 = vpack.c.b16 %v1671, %v1667
    %v1868 = vpack.c.b16 %v1676, %v1672
    %v1869 = vpack.c.b16 %v1677, %v1673
    %v1870 = vpack.c.b16 %v1678, %v1674
    %v1871 = vpack.c.b16 %v1679, %v1675
    %v1872 = vpack.c.b16 %v1684, %v1680
    %v1873 = vpack.c.b16 %v1685, %v1681
    %v1874 = vpack.c.b16 %v1686, %v1682
    %v1875 = vpack.c.b16 %v1687, %v1683
    %v1876 = vpack.c.b16 %v1692, %v1688
    %v1877 = vpack.c.b16 %v1693, %v1689
    %v1878 = vpack.c.b16 %v1694, %v1690
    %v1879 = vpack.c.b16 %v1695, %v1691
    %v1880 = vpack.c.b16 %v1700, %v1696
    %v1881 = vpack.c.b16 %v1701, %v1697
    %v1882 = vpack.c.b16 %v1702, %v1698
    %v1883 = vpack.c.b16 %v1703, %v1699
    %v1884 = vpack.c.b16 %v1708, %v1704
    %v1885 = vpack.c.b16 %v1709, %v1705
    %v1886 = vpack.c.b16 %v1710, %v1706
    %v1887 = vpack.c.b16 %v1711, %v1707
    %v1888 = vpack.c.b16 %v1716, %v1712
    %v1889 = vpack.c.b16 %v1717, %v1713
    %v1890 = vpack.c.b16 %v1718, %v1714
    %v1891 = vpack.c.b16 %v1719, %v1715
    %v1892 = vpack.c.b16 %v1724, %v1720
    %v1893 = vpack.c.b16 %v1725, %v1721
    %v1894 = vpack.c.b16 %v1726, %v1722
    %v1895 = vpack.c.b16 %v1727, %v1723
    %v1896 = vpack.c.b16 %v1732, %v1728
    %v1897 = vpack.c.b16 %v1733, %v1729
    %v1898 = vpack.c.b16 %v1734, %v1730
    %v1899 = vpack.c.b16 %v1735, %v1731
    %v1900 = vpack.c.b16 %v1740, %v1736
    %v1901 = vpack.c.b16 %v1741, %v1737
    %v1902 = vpack.c.b16 %v1742, %v1738
    %v1903 = vpack.c.b16 %v1743, %v1739
    %v1904 = vpack.c.b16 %v1748, %v1744
    %v1905 = vpack.c.b16 %v1749, %v1745
    %v1906 = vpack.c.b16 %v1750, %v1746
    %v1907 = vpack.c.b16 %v1751, %v1747
    %v1908 = vpack.c.b16 %v1756, %v1752
    %v1909 = vpack.c.b16 %v1757, %v1753
    %v1910 = vpack.c.b16 %v1758, %v1754
    %v1911 = vpack.c.b16 %v1759, %v1755
    %v1912 = vpack.c.b16 %v1764, %v1760
    %v1913 = vpack.c.b16 %v1765, %v1761
    %v1914 = vpack.c.b16 %v1766, %v1762
    %v1915 = vpack.c.b16 %v1767, %v1763
    %v1916 = vpack.c.b16 %v1772, %v1768
    %v1917 = vpack.c.b16 %v1773, %v1769
    %v1918 = vpack.c.b16 %v1774, %v1770
    %v1919 = vpack.c.b16 %v1775, %v1771
    %v1920 = vpack.c.b16 %v1780, %v1776
    %v1921 = vpack.c.b16 %v1781, %v1777
    %v1922 = vpack.c.b16 %v1782, %v1778
    %v1923 = vpack.c.b16 %v1783, %v1779
    %v1924 = vpack.c.b16 %v1788, %v1784
    %v1925 = vpack.c.b16 %v1789, %v1785
    %v1926 = vpack.c.b16 %v1790, %v1786
    %v1927 = vpack.c.b16 %v1791, %v1787
    %v1928 = vpack.c.b16 %v1796, %v1792
    %v1929 = vpack.c.b16 %v1797, %v1793
    %v1930 = vpack.c.b16 %v1798, %v1794
    %v1931 = vpack.c.b16 %v1799, %v1795
    %v1932 = vpack.c.b16 %v1804, %v1800
    %v1933 = vpack.c.b16 %v1805, %v1801
    %v1934 = vpack.c.b16 %v1806, %v1802
    %v1935 = vpack.c.b16 %v1807, %v1803
    %2064 = vmatprep.subr.bf16.mxu0 %v1837
    %2065 = vmatpush1.bf16.msra.mxu0 %v1836
    %2066 = vmatprep.subr.bf16.mxu0 %v1833
    %2067 = vmatpush1.bf16.msra.mxu0 %v1832
    %2068 = vmatprep.subr.bf16.mxu0 %v1829
    %2069 = vmatpush1.bf16.msra.mxu0 %v1828
    %2070 = vmatprep.subr.bf16.mxu0 %v1825
    %2071 = vmatpush1.bf16.msra.mxu0 %v1824
    %2072 = vmatprep.subr.bf16.mxu0 %v1821
    %2073 = vmatpush1.bf16.msra.mxu0 %v1820
    %2074 = vmatprep.subr.bf16.mxu0 %v1817
    %2075 = vmatpush1.bf16.msra.mxu0 %v1816
    %2076 = vmatprep.subr.bf16.mxu0 %v1813
    %2077 = vmatpush1.bf16.msra.mxu0 %v1812
    %2078 = vmatprep.subr.bf16.mxu0 %v1809
    %2079 = vmatpush1.bf16.msra.mxu0 %v1808
    %2080 = vmatprep.subr.bf16.mxu0 %v1869
    %2081 = vmatpush2.bf16.msra.mxu0 %v1868
    %2082 = vmatprep.subr.bf16.mxu0 %v1865
    %2083 = vmatpush2.bf16.msra.mxu0 %v1864
    %2084 = vmatprep.subr.bf16.mxu0 %v1861
    %2085 = vmatpush2.bf16.msra.mxu0 %v1860
    %2086 = vmatprep.subr.bf16.mxu0 %v1857
    %2087 = vmatpush2.bf16.msra.mxu0 %v1856
    %2088 = vmatprep.subr.bf16.mxu0 %v1853
    %2089 = vmatpush2.bf16.msra.mxu0 %v1852
    %2090 = vmatprep.subr.bf16.mxu0 %v1849
    %2091 = vmatpush2.bf16.msra.mxu0 %v1848
    %2092 = vmatprep.subr.bf16.mxu0 %v1845
    %2093 = vmatpush2.bf16.msra.mxu0 %v1844
    %2094 = vmatprep.subr.bf16.mxu0 %v1841
    %2095 = vmatpush2.bf16.msra.mxu0 %v1840
    %2096 = vmatprep.mubr.bf16.mxu0 %v1271
    %2097 = vmatmul.mubr.bf16.gmra.mxu0 %v1270
    %v2098 = vpop.f32.mrf.mxu0
    %v2099 = vadd.f32 %v1407, %v2098
    %v2100 = vpop.f32.mrf.mxu0
    %v2101 = vadd.f32 %v1411, %v2100
    %v2102 = vpop.f32.mrf.mxu0
    %v2103 = vpop.f32.mrf.mxu0
    %2104 = vdwg.mxu0
    %2105 = vmatprep.subr.bf16.mxu0 %v1901
    %2106 = vmatpush1.bf16.msra.mxu0 %v1900
    %2107 = vmatprep.subr.bf16.mxu0 %v1897
    %2108 = vmatpush1.bf16.msra.mxu0 %v1896
    %2109 = vmatprep.subr.bf16.mxu0 %v1893
    %2110 = vmatpush1.bf16.msra.mxu0 %v1892
    %2111 = vmatprep.subr.bf16.mxu0 %v1889
    %2112 = vmatpush1.bf16.msra.mxu0 %v1888
    %2113 = vmatprep.subr.bf16.mxu0 %v1885
    %2114 = vmatpush1.bf16.msra.mxu0 %v1884
    %2115 = vmatprep.subr.bf16.mxu0 %v1881
    %2116 = vmatpush1.bf16.msra.mxu0 %v1880
    %2117 = vmatprep.subr.bf16.mxu0 %v1877
    %2118 = vmatpush1.bf16.msra.mxu0 %v1876
    %2119 = vmatprep.subr.bf16.mxu0 %v1873
    %2120 = vmatpush1.bf16.msra.mxu0 %v1872
    %2121 = vmatprep.subr.bf16.mxu0 %v1933
    %2122 = vmatpush2.bf16.msra.mxu0 %v1932
    %2123 = vmatprep.subr.bf16.mxu0 %v1929
    %2124 = vmatpush2.bf16.msra.mxu0 %v1928
    %2125 = vmatprep.subr.bf16.mxu0 %v1925
    %2126 = vmatpush2.bf16.msra.mxu0 %v1924
    %2127 = vmatprep.subr.bf16.mxu0 %v1921
    %2128 = vmatpush2.bf16.msra.mxu0 %v1920
    %2129 = vmatprep.subr.bf16.mxu0 %v1917
    %2130 = vmatpush2.bf16.msra.mxu0 %v1916
    %2131 = vmatprep.subr.bf16.mxu0 %v1913
    %2132 = vmatpush2.bf16.msra.mxu0 %v1912
    %2133 = vmatprep.subr.bf16.mxu0 %v1909
    %2134 = vmatpush2.bf16.msra.mxu0 %v1908
    %2135 = vmatprep.subr.bf16.mxu0 %v1905
    %2136 = vmatpush2.bf16.msra.mxu0 %v1904
    %2137 = vmatprep.mubr.bf16.mxu0 %v1273
    %2138 = vmatmul.mubr.bf16.gmra.mxu0 %v1272
    %v2139 = vpop.f32.mrf.mxu0
    %v2140 = vadd.f32 %v2099, %v2139
    %v2141 = vpop.f32.mrf.mxu0
    %v2142 = vadd.f32 %v2101, %v2141
    %v2143 = vpop.f32.mrf.mxu0
    %v2144 = vpop.f32.mrf.mxu0
    %2145 = vdwg.mxu0
    %2146 = vmatprep.subr.bf16.mxu0 %v1839
    %2147 = vmatpush1.bf16.msra.mxu0 %v1838
    %2148 = vmatprep.subr.bf16.mxu0 %v1835
    %2149 = vmatpush1.bf16.msra.mxu0 %v1834
    %2150 = vmatprep.subr.bf16.mxu0 %v1831
    %2151 = vmatpush1.bf16.msra.mxu0 %v1830
    %2152 = vmatprep.subr.bf16.mxu0 %v1827
    %2153 = vmatpush1.bf16.msra.mxu0 %v1826
    %2154 = vmatprep.subr.bf16.mxu0 %v1823
    %2155 = vmatpush1.bf16.msra.mxu0 %v1822
    %2156 = vmatprep.subr.bf16.mxu0 %v1819
    %2157 = vmatpush1.bf16.msra.mxu0 %v1818
    %2158 = vmatprep.subr.bf16.mxu0 %v1815
    %2159 = vmatpush1.bf16.msra.mxu0 %v1814
    %2160 = vmatprep.subr.bf16.mxu0 %v1811
    %2161 = vmatpush1.bf16.msra.mxu0 %v1810
    %2162 = vmatprep.subr.bf16.mxu0 %v1871
    %2163 = vmatpush2.bf16.msra.mxu0 %v1870
    %2164 = vmatprep.subr.bf16.mxu0 %v1867
    %2165 = vmatpush2.bf16.msra.mxu0 %v1866
    %2166 = vmatprep.subr.bf16.mxu0 %v1863
    %2167 = vmatpush2.bf16.msra.mxu0 %v1862
    %2168 = vmatprep.subr.bf16.mxu0 %v1859
    %2169 = vmatpush2.bf16.msra.mxu0 %v1858
    %2170 = vmatprep.subr.bf16.mxu0 %v1855
    %2171 = vmatpush2.bf16.msra.mxu0 %v1854
    %2172 = vmatprep.subr.bf16.mxu0 %v1851
    %2173 = vmatpush2.bf16.msra.mxu0 %v1850
    %2174 = vmatprep.subr.bf16.mxu0 %v1847
    %2175 = vmatpush2.bf16.msra.mxu0 %v1846
    %2176 = vmatprep.subr.bf16.mxu0 %v1843
    %2177 = vmatpush2.bf16.msra.mxu0 %v1842
    %2178 = vmatprep.mubr.bf16.mxu0 %v1271
    %2179 = vmatmul.mubr.bf16.gmra.mxu0 %v1270
    %v2180 = vpop.f32.mrf.mxu0
    %v2181 = vadd.f32 %v1415, %v2180
    %v2182 = vpop.f32.mrf.mxu0
    %v2183 = vadd.f32 %v1419, %v2182
    %v2184 = vpop.f32.mrf.mxu0
    %v2185 = vpop.f32.mrf.mxu0
    %2186 = vdwg.mxu0
    %2187 = vmatprep.subr.bf16.mxu0 %v1903
    %2188 = vmatpush1.bf16.msra.mxu0 %v1902
    %2189 = vmatprep.subr.bf16.mxu0 %v1899
    %2190 = vmatpush1.bf16.msra.mxu0 %v1898
    %2191 = vmatprep.subr.bf16.mxu0 %v1895
    %2192 = vmatpush1.bf16.msra.mxu0 %v1894
    %2193 = vmatprep.subr.bf16.mxu0 %v1891
    %2194 = vmatpush1.bf16.msra.mxu0 %v1890
    %2195 = vmatprep.subr.bf16.mxu0 %v1887
    %2196 = vmatpush1.bf16.msra.mxu0 %v1886
    %2197 = vmatprep.subr.bf16.mxu0 %v1883
    %2198 = vmatpush1.bf16.msra.mxu0 %v1882
    %2199 = vmatprep.subr.bf16.mxu0 %v1879
    %2200 = vmatpush1.bf16.msra.mxu0 %v1878
    %2201 = vmatprep.subr.bf16.mxu0 %v1875
    %2202 = vmatpush1.bf16.msra.mxu0 %v1874
    %2203 = vmatprep.subr.bf16.mxu0 %v1935
    %2204 = vmatpush2.bf16.msra.mxu0 %v1934
    %2205 = vmatprep.subr.bf16.mxu0 %v1931
    %2206 = vmatpush2.bf16.msra.mxu0 %v1930
    %2207 = vmatprep.subr.bf16.mxu0 %v1927
    %2208 = vmatpush2.bf16.msra.mxu0 %v1926
    %2209 = vmatprep.subr.bf16.mxu0 %v1923
    %2210 = vmatpush2.bf16.msra.mxu0 %v1922
    %2211 = vmatprep.subr.bf16.mxu0 %v1919
    %2212 = vmatpush2.bf16.msra.mxu0 %v1918
    %2213 = vmatprep.subr.bf16.mxu0 %v1915
    %2214 = vmatpush2.bf16.msra.mxu0 %v1914
    %2215 = vmatprep.subr.bf16.mxu0 %v1911
    %2216 = vmatpush2.bf16.msra.mxu0 %v1910
    %2217 = vmatprep.subr.bf16.mxu0 %v1907
    %2218 = vmatpush2.bf16.msra.mxu0 %v1906
    %2219 = vmatprep.mubr.bf16.mxu0 %v1273
    %2220 = vmatmul.mubr.bf16.gmra.mxu0 %v1272
    %v2221 = vpop.f32.mrf.mxu0
    %v2222 = vadd.f32 %v2181, %v2221
    %v2223 = vpop.f32.mrf.mxu0
    %v2224 = vadd.f32 %v2183, %v2223
    %v2225 = vpop.f32.mrf.mxu0
    %v2226 = vpop.f32.mrf.mxu0
    %2227 = vdwg.mxu0
    %v2228 = vmax.f32 %v2140, 0.0
    %v2229 = vmax.f32 %v2142, 0.0
    %v2230 = vmax.f32 %v2222, 0.0
    %v2231 = vmax.f32 %v2224, 0.0
    %v2232 = vadd.f32 %v83, %v2228
    %v2233 = vadd.f32 %v84, %v2229
    %v2234 = vadd.f32 %v85, %v2230
    %v2235 = vadd.f32 %v86, %v2231
    %2236 = vst [vmem:[#allocation2] sm:$0xff] %v2232
    %2237 = vst [vmem:[#allocation2 + $0x8] sm:$0xff] %v2233
    %2238 = vst [vmem:[#allocation2 + $0x10] sm:$0xff] %v2234
    %2239 = vst [vmem:[#allocation2 + $0x18] sm:$0xff] %v2235
    // Predicated region
    $region50: #{res_cheb_gc_diff_stack.1} parent=1 // pred_check
      %p2240 = pneg %p71
    $region51: #{res_cheb_gc_diff_stack.1} parent=1 // pred_check_branch
      %2242 = sbr.rel (%p2240) target = $region53
    $region52: #{res_cheb_gc_diff_stack.1} parent=1 // pred_region
      %v2243 = vld [vmem:[#allocation2] sm:$0xff]
      %v2244 = vld [vmem:[#allocation2 + $0x8] sm:$0xff]
      %v2245 = vld [vmem:[#allocation2 + $0x10] sm:$0xff]
      %v2246 = vld [vmem:[#allocation2 + $0x18] sm:$0xff]
      %2247 = vst [vmem:[%s8] sm:$0xff] %v2243
      %2248 = vst [vmem:[%s8 + $0x8] sm:$0xff] %v2244
      %2249 = vst [vmem:[%s8 + $0x10] sm:$0xff] %v2245
      %2250 = vst [vmem:[%s8 + $0x18] sm:$0xff] %v2246
    $region53: #{res_cheb_gc_diff_stack.1} parent=1 // pred_fallthru
      _
    // Predicated region
    $region54: #{res_cheb_gc_diff_stack.1} parent=1 // pred_check
      _
    $region55: #{res_cheb_gc_diff_stack.1} parent=1 // pred_check_branch
      %2252 = sbr.rel (0) target = $region57
    $region56: #{res_cheb_gc_diff_stack.1} parent=1 // pred_region
      _
    $region57: #{res_cheb_gc_diff_stack.1} parent=1 // pred_fallthru
      _
    // Predicated region
    $region58: #{res_cheb_gc_diff_stack.1} parent=1 // pred_check
      _
    $region59: #{res_cheb_gc_diff_stack.1} parent=1 // pred_check_branch
      %2254 = sbr.rel (0) target = $region61
    $region60: #{res_cheb_gc_diff_stack.1} parent=1 // pred_region
      _
    $region61: #{res_cheb_gc_diff_stack.1} parent=1 // pred_fallthru
      _
    %2255 = vsyncpa [#allocation4], 1
    %2256 = vsyncpa [#allocation6], 1

</llo_original>
